<compile_context>
chip_gen: v5e
topology: v5e:2x2
jax: 0.10.0
libtpu: 0.0.40
codegen_flags: <defaults>
</compile_context>

<pallas_src>
import jax
import jax.numpy as jnp
from jax import lax
from jax.experimental import pallas as pl
from jax.experimental.pallas import tpu as pltpu


def _round_up(x, m):
    return ((x + m - 1) // m) * m


def _gate_act(gates, H):
    """PyTorch LSTM gate order: i, f, g, o.

    With H=32 each gate is a 32-lane sub-vreg slice; padding H to 128 would 4x
    the EUP transcendental work just to remove lane selects, so at these sizes
    the simple slicing is kept (gate math stays f32 for v5e portability).
    """
    i_g = jax.nn.sigmoid(gates[:, 0 * H:1 * H])
    f_g = jax.nn.sigmoid(gates[:, 1 * H:2 * H])
    g_g = jnp.tanh(gates[:, 2 * H:3 * H])
    o_g = jax.nn.sigmoid(gates[:, 3 * H:4 * H])
    return i_g, f_g, g_g, o_g


# ----------------------------------------------------------------------------- kernel

def make_seq2seq_kernel(Bp):
    """Fused encoder + decoder kernel, closed over the padded batch size Bp."""

    def kernel(enc_x_ref, dec_x_ref,
               enc_wih_ref, enc_whh_ref, enc_b_ref,
               dec_wih_ref, dec_whh_ref, dec_b_ref,
               wout_ref, bout_ref,
               logits_ref, gx_sc):
        H = enc_whh_ref.shape[0]
        Ti = enc_x_ref.shape[0] // Bp          # encoder timesteps (static)
        Td = dec_x_ref.shape[0] // Bp          # decoder timesteps (static)

        # ---- encoder (a): batched input projection for every timestep, one MXU pass
        gx_sc[...] = (jnp.dot(enc_x_ref[...].astype(jnp.bfloat16), enc_wih_ref[...],
                              preferred_element_type=jnp.float32) + enc_b_ref[...])

        enc_whh = enc_whh_ref[...]             # (H, 4H) bf16, held resident

        # ---- encoder (b): serial recurrence, only h @ W_hh per step, values carried
        def step(t, carry):
            h, c = carry
            start = pl.multiple_of(t * Bp, 8)  # Bp is a multiple of 8 -> aligned slice
            gates = gx_sc[pl.ds(start, Bp), :] + jnp.dot(
                h.astype(jnp.bfloat16), enc_whh, preferred_element_type=jnp.float32)
            i_g, f_g, g_g, o_g = _gate_act(gates, H)
            c_new = f_g * c + i_g * g_g
            h_new = o_g * jnp.tanh(c_new)
            return h_new, c_new

        h0 = jnp.zeros((Bp, H), jnp.float32)
        c0 = jnp.zeros((Bp, H), jnp.float32)
        # Full unroll is fine for small Ti; use a bounded unroll (e.g. 4/8) if Ti grows.
        h, c = lax.fori_loop(0, Ti, step, (h0, c0), unroll=True)

        # ---- decoder: all Td steps fused; (h, c) never leave VMEM.
        # gh = h @ W_hh + b computed ONCE, broadcast across the Td repeated steps.
        gh = (jnp.dot(h.astype(jnp.bfloat16), dec_whh_ref[...],
                      preferred_element_type=jnp.float32) + dec_b_ref[...])      # (Bp, 4H)
        gh_rows = jnp.concatenate([gh] * Td, axis=0)                             # (Td*Bp, 4H)
        c_rows = jnp.concatenate([c] * Td, axis=0)                               # (Td*Bp, H)

        gates = (jnp.dot(dec_x_ref[...].astype(jnp.bfloat16), dec_wih_ref[...],
                         preferred_element_type=jnp.float32) + gh_rows)
        i_g, f_g, g_g, o_g = _gate_act(gates, H)
        c_new = f_g * c_rows + i_g * g_g
        h_new = o_g * jnp.tanh(c_new)

        # Lane-dense (Vp = multiple of 128) logits store: unmasked full-lane vst.
        logits_ref[...] = (jnp.dot(h_new.astype(jnp.bfloat16), wout_ref[...],
                                   preferred_element_type=jnp.float32) + bout_ref[...])

    return kernel


# ----------------------------------------------------------------------------- wrapper

def run_seq2seq(enc_x2, dec_x2, enc_w_ih, enc_w_hh, enc_b,
                dec_w_ih, dec_w_hh, dec_b, w_out_p, b_out_p, Bp):
    Np = dec_x2.shape[0]
    Vp = w_out_p.shape[1]
    H = enc_w_hh.shape[0]
    enc_rows = enc_x2.shape[0]

    vmem_specs = [pl.BlockSpec(memory_space=pltpu.MemorySpace.VMEM) for _ in range(10)]
    # TODO(synk): at realistic (large V / H) sizes, tile the (H, Vp) projection and
    # the (Np, Vp) logits over a 'parallel' grid axis (v7x 2-TC sharding + 64 MiB VMEM).
    return pl.pallas_call(
        make_seq2seq_kernel(Bp),
        out_shape=jax.ShapeDtypeStruct((Np, Vp), jnp.float32),
        in_specs=vmem_specs,
        out_specs=pl.BlockSpec(memory_space=pltpu.MemorySpace.VMEM),
        scratch_shapes=[pltpu.VMEM((enc_rows, 4 * H), jnp.float32)],
    )(enc_x2, dec_x2, enc_w_ih, enc_w_hh, enc_b,
      dec_w_ih, dec_w_hh, dec_b, w_out_p, b_out_p)


def init_params(key, src_vocab, tar_vocab, emb_dim, hidn_dim):
    ks = jax.random.split(key, 10)
    s = 0.1
    n = lambda k, shape: (s * jax.random.normal(k, shape)).astype(jnp.float32)
    return dict(
        enc_emb=n(ks[0], (src_vocab, emb_dim)),
        enc_w_ih=n(ks[1], (emb_dim, 4 * hidn_dim)),
        enc_w_hh=n(ks[2], (hidn_dim, 4 * hidn_dim)),
        enc_b=n(ks[3], (1, 4 * hidn_dim)),
        dec_emb=n(ks[4], (tar_vocab, emb_dim)),
        dec_w_ih=n(ks[5], (emb_dim, 4 * hidn_dim)),
        dec_w_hh=n(ks[6], (hidn_dim, 4 * hidn_dim)),
        dec_b=n(ks[7], (1, 4 * hidn_dim)),
        dec_w_out=n(ks[8], (hidn_dim, tar_vocab)),
        dec_b_out=n(ks[9], (1, tar_vocab)),
    )


def seq2seq_forward(params, inputs, targets):
    """inputs: (B, Ti) int32 token ids; targets: (B, Tt) int32 token ids."""
    B, Ti = inputs.shape
    _, Tt = targets.shape
    E = params["enc_emb"].shape[1]
    H = params["enc_w_hh"].shape[0]
    V = params["dec_w_out"].shape[1]

    Bp = _round_up(B, 8)       # sublane-pad the batch
    Ep = _round_up(E, 128)     # lane-pad embedding dim (free on MXU, full-lane x loads)
    Vp = _round_up(V, 128)     # lane-dense logits
    Td = Tt - 1

    # TODO(synk): embedding gathers stay in XLA; an in-kernel gather via scalar
    # prefetch of the token ids would remove this wrapper glue.
    enc_x = params["enc_emb"][inputs]                                    # (B, Ti, E)
    enc_x = jnp.pad(enc_x, ((0, Bp - B), (0, 0), (0, Ep - E)))           # (Bp, Ti, Ep)
    enc_x2 = jnp.transpose(enc_x, (1, 0, 2)).reshape(Ti * Bp, Ep)        # (Ti*Bp, Ep)

    dec_x = params["dec_emb"][targets[:, :Td]]                           # (B, Td, E)
    dec_x = jnp.pad(dec_x, ((0, Bp - B), (0, 0), (0, Ep - E)))           # (Bp, Td, Ep)
    dec_x2 = jnp.transpose(dec_x, (1, 0, 2)).reshape(Td * Bp, Ep)        # (Td*Bp, Ep)

    bf16 = jnp.bfloat16
    enc_w_ih = jnp.pad(params["enc_w_ih"], ((0, Ep - E), (0, 0))).astype(bf16)
    dec_w_ih = jnp.pad(params["dec_w_ih"], ((0, Ep - E), (0, 0))).astype(bf16)
    enc_w_hh = params["enc_w_hh"].astype(bf16)
    dec_w_hh = params["dec_w_hh"].astype(bf16)
    w_out_p = jnp.pad(params["dec_w_out"], ((0, 0), (0, Vp - V))).astype(bf16)
    b_out_p = jnp.pad(params["dec_b_out"], ((0, 0), (0, Vp - V)))

    logits_full = run_seq2seq(enc_x2, dec_x2,
                              enc_w_ih, enc_w_hh, params["enc_b"],
                              dec_w_ih, dec_w_hh, params["dec_b"],
                              w_out_p, b_out_p, Bp)                      # (Td*Bp, Vp)
    logits = logits_full.reshape(Td, Bp, Vp)[:, :B, :V]                  # (Td, B, V)

    dec_outputs = jnp.concatenate(
        [jnp.zeros((1, B, V), jnp.float32), logits], axis=0)             # step 0 stays zeros
    dec_outputs = jnp.transpose(dec_outputs, (1, 0, 2))                  # (B, Tt, V)
    predictions = targets.astype(jnp.float32)                            # teacher forcing
    return dec_outputs, predictions


def reference_forward(params, inputs, targets):
    """Pure-JAX f32 reference mirroring the PyTorch forward (teacher forcing True)."""
    B, Ti = inputs.shape
    _, Tt = targets.shape
    H = params["enc_w_hh"].shape[0]
    V = params["dec_w_out"].shape[1]

    def cell(x, h, c, wih, whh, b):
        g = x @ wih + h @ whh + b
        i = jax.nn.sigmoid(g[:, :H]); f = jax.nn.sigmoid(g[:, H:2 * H])
        gg = jnp.tanh(g[:, 2 * H:3 * H]); o = jax.nn.sigmoid(g[:, 3 * H:])
        c2 = f * c + i * gg
        return o * jnp.tanh(c2), c2

    h = jnp.zeros((B, H), jnp.float32)
    c = jnp.zeros((B, H), jnp.float32)
    for t in range(Ti):
        h, c = cell(params["enc_emb"][inputs[:, t]], h, c,
                    params["enc_w_ih"], params["enc_w_hh"], params["enc_b"])
    outs = [jnp.zeros((B, V), jnp.float32)]
    for t in range(1, Tt):
        hn, _cn = cell(params["dec_emb"][targets[:, t - 1]], h, c,
                       params["dec_w_ih"], params["dec_w_hh"], params["dec_b"])
        outs.append(hn @ params["dec_w_out"] + params["dec_b_out"])
    return jnp.stack(outs, axis=1), targets.astype(jnp.float32)


if __name__ == "__main__":
    B, Ti, Tt = 2, 8, 8
    SRC_VOCAB, TAR_VOCAB = 16, 16
    EMB, HID = 32, 32

    key = jax.random.PRNGKey(0)
    k_p, k_in, k_tg = jax.random.split(key, 3)
    params = init_params(k_p, SRC_VOCAB, TAR_VOCAB, EMB, HID)
    inputs = jax.random.randint(k_in, (B, Ti), 0, SRC_VOCAB, dtype=jnp.int32)
    targets = jax.random.randint(k_tg, (B, Tt), 0, TAR_VOCAB, dtype=jnp.int32)

    dec_outputs, predictions = seq2seq_forward(params, inputs, targets)
    jax.block_until_ready((dec_outputs, predictions))

    ref_outputs, ref_preds = reference_forward(params, inputs, targets)
    assert dec_outputs.shape == (B, Tt, TAR_VOCAB)
    assert predictions.shape == (B, Tt)
    # bf16 MXU operands (f32 accumulation) -> slightly looser tolerance vs f32 reference.
    assert jnp.allclose(dec_outputs, ref_outputs, atol=2e-2, rtol=2e-2)
    assert jnp.allclose(predictions, ref_preds)

    print("KERNEL_OK")
</pallas_src>

<mosaic_0001>
module attributes {stable_mosaic.version = 11 : i64} {
  func.func @kernel(%arg0: memref<64x128xf32, #tpu.memory_space<vmem>>, %arg1: memref<56x128xf32, #tpu.memory_space<vmem>>, %arg2: memref<128x128xbf16, #tpu.memory_space<vmem>>, %arg3: memref<32x128xbf16, #tpu.memory_space<vmem>>, %arg4: memref<1x128xf32, #tpu.memory_space<vmem>>, %arg5: memref<128x128xbf16, #tpu.memory_space<vmem>>, %arg6: memref<32x128xbf16, #tpu.memory_space<vmem>>, %arg7: memref<1x128xf32, #tpu.memory_space<vmem>>, %arg8: memref<32x128xbf16, #tpu.memory_space<vmem>>, %arg9: memref<1x128xf32, #tpu.memory_space<vmem>>, %arg10: memref<56x128xf32, #tpu.memory_space<vmem>>, %arg11: memref<64x128xf32, #tpu.memory_space<vmem>>) attributes {dimension_semantics = [], scalar_prefetch = 0 : i64, scratch_operands = 1 : i64, tpu.core_type = #tpu.core_type<tc>} {
    %c0 = arith.constant 0 : index
    %c0_0 = arith.constant 0 : index
    %0 = vector.load %arg0[%c0, %c0_0] : memref<64x128xf32, #tpu.memory_space<vmem>>, vector<64x128xf32>
    %1 = arith.truncf %0 : vector<64x128xf32> to vector<64x128xbf16>
    %c0_1 = arith.constant 0 : index
    %c0_2 = arith.constant 0 : index
    %2 = vector.load %arg2[%c0_1, %c0_2] : memref<128x128xbf16, #tpu.memory_space<vmem>>, vector<128x128xbf16>
    %cst = arith.constant dense<0.000000e+00> : vector<64x128xf32>
    %3 = tpu.matmul %1, %2, %cst {dimension_numbers = #tpu.dot_dimension_numbers<[1], [0], [0], [1], [0, 0, 1, 1], [], []>} : vector<64x128xbf16>, vector<128x128xbf16>, vector<64x128xf32> -> vector<64x128xf32>
    %c0_3 = arith.constant 0 : index
    %c0_4 = arith.constant 0 : index
    %4 = vector.load %arg4[%c0_3, %c0_4] : memref<1x128xf32, #tpu.memory_space<vmem>>, vector<1x128xf32>
    %5 = vector.broadcast %4 : vector<1x128xf32> to vector<64x128xf32>
    %6 = arith.addf %3, %5 : vector<64x128xf32>
    %c0_5 = arith.constant 0 : index
    %c0_6 = arith.constant 0 : index
    %7 = vector.load %arg11[%c0_5, %c0_6] : memref<64x128xf32, #tpu.memory_space<vmem>>, vector<64x128xf32>
    tpu.vector_store %arg11[%c0_5, %c0_6], %6 {strides = array<i32>} : memref<64x128xf32, #tpu.memory_space<vmem>>, vector<64x128xf32>,
    %c0_7 = arith.constant 0 : index
    %c0_8 = arith.constant 0 : index
    %8 = vector.load %arg3[%c0_7, %c0_8] : memref<32x128xbf16, #tpu.memory_space<vmem>>, vector<32x128xbf16>
    %cst_9 = arith.constant 0.000000e+00 : f32
    %9 = vector.broadcast %cst_9 : f32 to vector<8x32xf32>
    %cst_10 = arith.constant 0.000000e+00 : f32
    %10 = vector.broadcast %cst_10 : f32 to vector<8x32xf32>
    %c0_i32 = arith.constant 0 : i32
    %c8_i32 = arith.constant 8 : i32
    %11 = arith.muli %c0_i32, %c8_i32 : i32
    %12 = tpu.assume_multiple %11, 8 : i32
    %13 = arith.index_cast %12 : i32 to index
    %c0_11 = arith.constant 0 : index
    %14 = vector.load %arg11[%13, %c0_11] : memref<64x128xf32, #tpu.memory_space<vmem>>, vector<8x128xf32>
    %15 = arith.truncf %9 : vector<8x32xf32> to vector<8x32xbf16>
    %cst_12 = arith.constant dense<0.000000e+00> : vector<8x128xf32>
    %16 = tpu.matmul %15, %8, %cst_12 {dimension_numbers = #tpu.dot_dimension_numbers<[1], [0], [0], [1], [0, 0, 1, 1], [], []>} : vector<8x32xbf16>, vector<32x128xbf16>, vector<8x128xf32> -> vector<8x128xf32>
    %17 = arith.addf %14, %16 : vector<8x128xf32>
    %18 = vector.extract_strided_slice %17 {offsets = [0, 0], sizes = [8, 32], strides = [1, 1]} : vector<8x128xf32> to vector<8x32xf32>
    %19 = arith.negf %18 : vector<8x32xf32>
    %20 = math.exp %19 : vector<8x32xf32>
    %cst_13 = arith.constant 1.000000e+00 : f32
    %21 = vector.broadcast %cst_13 : f32 to vector<8x32xf32>
    %22 = arith.addf %21, %20 : vector<8x32xf32>
    %23 = arith.divf %21, %22 : vector<8x32xf32>
    %24 = vector.extract_strided_slice %17 {offsets = [0, 32], sizes = [8, 32], strides = [1, 1]} : vector<8x128xf32> to vector<8x32xf32>
    %25 = arith.negf %24 : vector<8x32xf32>
    %26 = math.exp %25 : vector<8x32xf32>
    %cst_14 = arith.constant 1.000000e+00 : f32
    %27 = vector.broadcast %cst_14 : f32 to vector<8x32xf32>
    %28 = arith.addf %27, %26 : vector<8x32xf32>
    %29 = arith.divf %27, %28 : vector<8x32xf32>
    %30 = vector.extract_strided_slice %17 {offsets = [0, 64], sizes = [8, 32], strides = [1, 1]} : vector<8x128xf32> to vector<8x32xf32>
    %31 = math.tanh %30 : vector<8x32xf32>
    %32 = vector.extract_strided_slice %17 {offsets = [0, 96], sizes = [8, 32], strides = [1, 1]} : vector<8x128xf32> to vector<8x32xf32>
    %33 = arith.negf %32 : vector<8x32xf32>
    %34 = math.exp %33 : vector<8x32xf32>
    %cst_15 = arith.constant 1.000000e+00 : f32
    %35 = vector.broadcast %cst_15 : f32 to vector<8x32xf32>
    %36 = arith.addf %35, %34 : vector<8x32xf32>
    %37 = arith.divf %35, %36 : vector<8x32xf32>
    %38 = arith.mulf %29, %10 : vector<8x32xf32>
    %39 = arith.mulf %23, %31 : vector<8x32xf32>
    %40 = arith.addf %38, %39 : vector<8x32xf32>
    %41 = math.tanh %40 : vector<8x32xf32>
    %42 = arith.mulf %37, %41 : vector<8x32xf32>
    %c1_i32 = arith.constant 1 : i32
    %c8_i32_16 = arith.constant 8 : i32
    %43 = arith.muli %c1_i32, %c8_i32_16 : i32
    %44 = tpu.assume_multiple %43, 8 : i32
    %45 = arith.index_cast %44 : i32 to index
    %c0_17 = arith.constant 0 : index
    %46 = vector.load %arg11[%45, %c0_17] : memref<64x128xf32, #tpu.memory_space<vmem>>, vector<8x128xf32>
    %47 = arith.truncf %42 : vector<8x32xf32> to vector<8x32xbf16>
    %cst_18 = arith.constant dense<0.000000e+00> : vector<8x128xf32>
    %48 = tpu.matmul %47, %8, %cst_18 {dimension_numbers = #tpu.dot_dimension_numbers<[1], [0], [0], [1], [0, 0, 1, 1], [], []>} : vector<8x32xbf16>, vector<32x128xbf16>, vector<8x128xf32> -> vector<8x128xf32>
    %49 = arith.addf %46, %48 : vector<8x128xf32>
    %50 = vector.extract_strided_slice %49 {offsets = [0, 0], sizes = [8, 32], strides = [1, 1]} : vector<8x128xf32> to vector<8x32xf32>
    %51 = arith.negf %50 : vector<8x32xf32>
    %52 = math.exp %51 : vector<8x32xf32>
    %cst_19 = arith.constant 1.000000e+00 : f32
    %53 = vector.broadcast %cst_19 : f32 to vector<8x32xf32>
    %54 = arith.addf %53, %52 : vector<8x32xf32>
    %55 = arith.divf %53, %54 : vector<8x32xf32>
    %56 = vector.extract_strided_slice %49 {offsets = [0, 32], sizes = [8, 32], strides = [1, 1]} : vector<8x128xf32> to vector<8x32xf32>
    %57 = arith.negf %56 : vector<8x32xf32>
    %58 = math.exp %57 : vector<8x32xf32>
    %cst_20 = arith.constant 1.000000e+00 : f32
    %59 = vector.broadcast %cst_20 : f32 to vector<8x32xf32>
    %60 = arith.addf %59, %58 : vector<8x32xf32>
    %61 = arith.divf %59, %60 : vector<8x32xf32>
    %62 = vector.extract_strided_slice %49 {offsets = [0, 64], sizes = [8, 32], strides = [1, 1]} : vector<8x128xf32> to vector<8x32xf32>
    %63 = math.tanh %62 : vector<8x32xf32>
    %64 = vector.extract_strided_slice %49 {offsets = [0, 96], sizes = [8, 32], strides = [1, 1]} : vector<8x128xf32> to vector<8x32xf32>
    %65 = arith.negf %64 : vector<8x32xf32>
    %66 = math.exp %65 : vector<8x32xf32>
    %cst_21 = arith.constant 1.000000e+00 : f32
    %67 = vector.broadcast %cst_21 : f32 to vector<8x32xf32>
    %68 = arith.addf %67, %66 : vector<8x32xf32>
    %69 = arith.divf %67, %68 : vector<8x32xf32>
    %70 = arith.mulf %61, %40 : vector<8x32xf32>
    %71 = arith.mulf %55, %63 : vector<8x32xf32>
    %72 = arith.addf %70, %71 : vector<8x32xf32>
    %73 = math.tanh %72 : vector<8x32xf32>
    %74 = arith.mulf %69, %73 : vector<8x32xf32>
    %c2_i32 = arith.constant 2 : i32
    %c8_i32_22 = arith.constant 8 : i32
    %75 = arith.muli %c2_i32, %c8_i32_22 : i32
    %76 = tpu.assume_multiple %75, 8 : i32
    %77 = arith.index_cast %76 : i32 to index
    %c0_23 = arith.constant 0 : index
    %78 = vector.load %arg11[%77, %c0_23] : memref<64x128xf32, #tpu.memory_space<vmem>>, vector<8x128xf32>
    %79 = arith.truncf %74 : vector<8x32xf32> to vector<8x32xbf16>
    %cst_24 = arith.constant dense<0.000000e+00> : vector<8x128xf32>
    %80 = tpu.matmul %79, %8, %cst_24 {dimension_numbers = #tpu.dot_dimension_numbers<[1], [0], [0], [1], [0, 0, 1, 1], [], []>} : vector<8x32xbf16>, vector<32x128xbf16>, vector<8x128xf32> -> vector<8x128xf32>
    %81 = arith.addf %78, %80 : vector<8x128xf32>
    %82 = vector.extract_strided_slice %81 {offsets = [0, 0], sizes = [8, 32], strides = [1, 1]} : vector<8x128xf32> to vector<8x32xf32>
    %83 = arith.negf %82 : vector<8x32xf32>
    %84 = math.exp %83 : vector<8x32xf32>
    %cst_25 = arith.constant 1.000000e+00 : f32
    %85 = vector.broadcast %cst_25 : f32 to vector<8x32xf32>
    %86 = arith.addf %85, %84 : vector<8x32xf32>
    %87 = arith.divf %85, %86 : vector<8x32xf32>
    %88 = vector.extract_strided_slice %81 {offsets = [0, 32], sizes = [8, 32], strides = [1, 1]} : vector<8x128xf32> to vector<8x32xf32>
    %89 = arith.negf %88 : vector<8x32xf32>
    %90 = math.exp %89 : vector<8x32xf32>
    %cst_26 = arith.constant 1.000000e+00 : f32
    %91 = vector.broadcast %cst_26 : f32 to vector<8x32xf32>
    %92 = arith.addf %91, %90 : vector<8x32xf32>
    %93 = arith.divf %91, %92 : vector<8x32xf32>
    %94 = vector.extract_strided_slice %81 {offsets = [0, 64], sizes = [8, 32], strides = [1, 1]} : vector<8x128xf32> to vector<8x32xf32>
    %95 = math.tanh %94 : vector<8x32xf32>
    %96 = vector.extract_strided_slice %81 {offsets = [0, 96], sizes = [8, 32], strides = [1, 1]} : vector<8x128xf32> to vector<8x32xf32>
    %97 = arith.negf %96 : vector<8x32xf32>
    %98 = math.exp %97 : vector<8x32xf32>
    %cst_27 = arith.constant 1.000000e+00 : f32
    %99 = vector.broadcast %cst_27 : f32 to vector<8x32xf32>
    %100 = arith.addf %99, %98 : vector<8x32xf32>
    %101 = arith.divf %99, %100 : vector<8x32xf32>
    %102 = arith.mulf %93, %72 : vector<8x32xf32>
    %103 = arith.mulf %87, %95 : vector<8x32xf32>
    %104 = arith.addf %102, %103 : vector<8x32xf32>
    %105 = math.tanh %104 : vector<8x32xf32>
    %106 = arith.mulf %101, %105 : vector<8x32xf32>
    %c3_i32 = arith.constant 3 : i32
    %c8_i32_28 = arith.constant 8 : i32
    %107 = arith.muli %c3_i32, %c8_i32_28 : i32
    %108 = tpu.assume_multiple %107, 8 : i32
    %109 = arith.index_cast %108 : i32 to index
    %c0_29 = arith.constant 0 : index
    %110 = vector.load %arg11[%109, %c0_29] : memref<64x128xf32, #tpu.memory_space<vmem>>, vector<8x128xf32>
    %111 = arith.truncf %106 : vector<8x32xf32> to vector<8x32xbf16>
    %cst_30 = arith.constant dense<0.000000e+00> : vector<8x128xf32>
    %112 = tpu.matmul %111, %8, %cst_30 {dimension_numbers = #tpu.dot_dimension_numbers<[1], [0], [0], [1], [0, 0, 1, 1], [], []>} : vector<8x32xbf16>, vector<32x128xbf16>, vector<8x128xf32> -> vector<8x128xf32>
    %113 = arith.addf %110, %112 : vector<8x128xf32>
    %114 = vector.extract_strided_slice %113 {offsets = [0, 0], sizes = [8, 32], strides = [1, 1]} : vector<8x128xf32> to vector<8x32xf32>
    %115 = arith.negf %114 : vector<8x32xf32>
    %116 = math.exp %115 : vector<8x32xf32>
    %cst_31 = arith.constant 1.000000e+00 : f32
    %117 = vector.broadcast %cst_31 : f32 to vector<8x32xf32>
    %118 = arith.addf %117, %116 : vector<8x32xf32>
    %119 = arith.divf %117, %118 : vector<8x32xf32>
    %120 = vector.extract_strided_slice %113 {offsets = [0, 32], sizes = [8, 32], strides = [1, 1]} : vector<8x128xf32> to vector<8x32xf32>
    %121 = arith.negf %120 : vector<8x32xf32>
    %122 = math.exp %121 : vector<8x32xf32>
    %cst_32 = arith.constant 1.000000e+00 : f32
    %123 = vector.broadcast %cst_32 : f32 to vector<8x32xf32>
    %124 = arith.addf %123, %122 : vector<8x32xf32>
    %125 = arith.divf %123, %124 : vector<8x32xf32>
    %126 = vector.extract_strided_slice %113 {offsets = [0, 64], sizes = [8, 32], strides = [1, 1]} : vector<8x128xf32> to vector<8x32xf32>
    %127 = math.tanh %126 : vector<8x32xf32>
    %128 = vector.extract_strided_slice %113 {offsets = [0, 96], sizes = [8, 32], strides = [1, 1]} : vector<8x128xf32> to vector<8x32xf32>
    %129 = arith.negf %128 : vector<8x32xf32>
    %130 = math.exp %129 : vector<8x32xf32>
    %cst_33 = arith.constant 1.000000e+00 : f32
    %131 = vector.broadcast %cst_33 : f32 to vector<8x32xf32>
    %132 = arith.addf %131, %130 : vector<8x32xf32>
    %133 = arith.divf %131, %132 : vector<8x32xf32>
    %134 = arith.mulf %125, %104 : vector<8x32xf32>
    %135 = arith.mulf %119, %127 : vector<8x32xf32>
    %136 = arith.addf %134, %135 : vector<8x32xf32>
    %137 = math.tanh %136 : vector<8x32xf32>
    %138 = arith.mulf %133, %137 : vector<8x32xf32>
    %c4_i32 = arith.constant 4 : i32
    %c8_i32_34 = arith.constant 8 : i32
    %139 = arith.muli %c4_i32, %c8_i32_34 : i32
    %140 = tpu.assume_multiple %139, 8 : i32
    %141 = arith.index_cast %140 : i32 to index
    %c0_35 = arith.constant 0 : index
    %142 = vector.load %arg11[%141, %c0_35] : memref<64x128xf32, #tpu.memory_space<vmem>>, vector<8x128xf32>
    %143 = arith.truncf %138 : vector<8x32xf32> to vector<8x32xbf16>
    %cst_36 = arith.constant dense<0.000000e+00> : vector<8x128xf32>
    %144 = tpu.matmul %143, %8, %cst_36 {dimension_numbers = #tpu.dot_dimension_numbers<[1], [0], [0], [1], [0, 0, 1, 1], [], []>} : vector<8x32xbf16>, vector<32x128xbf16>, vector<8x128xf32> -> vector<8x128xf32>
    %145 = arith.addf %142, %144 : vector<8x128xf32>
    %146 = vector.extract_strided_slice %145 {offsets = [0, 0], sizes = [8, 32], strides = [1, 1]} : vector<8x128xf32> to vector<8x32xf32>
    %147 = arith.negf %146 : vector<8x32xf32>
    %148 = math.exp %147 : vector<8x32xf32>
    %cst_37 = arith.constant 1.000000e+00 : f32
    %149 = vector.broadcast %cst_37 : f32 to vector<8x32xf32>
    %150 = arith.addf %149, %148 : vector<8x32xf32>
    %151 = arith.divf %149, %150 : vector<8x32xf32>
    %152 = vector.extract_strided_slice %145 {offsets = [0, 32], sizes = [8, 32], strides = [1, 1]} : vector<8x128xf32> to vector<8x32xf32>
    %153 = arith.negf %152 : vector<8x32xf32>
    %154 = math.exp %153 : vector<8x32xf32>
    %cst_38 = arith.constant 1.000000e+00 : f32
    %155 = vector.broadcast %cst_38 : f32 to vector<8x32xf32>
    %156 = arith.addf %155, %154 : vector<8x32xf32>
    %157 = arith.divf %155, %156 : vector<8x32xf32>
    %158 = vector.extract_strided_slice %145 {offsets = [0, 64], sizes = [8, 32], strides = [1, 1]} : vector<8x128xf32> to vector<8x32xf32>
    %159 = math.tanh %158 : vector<8x32xf32>
    %160 = vector.extract_strided_slice %145 {offsets = [0, 96], sizes = [8, 32], strides = [1, 1]} : vector<8x128xf32> to vector<8x32xf32>
    %161 = arith.negf %160 : vector<8x32xf32>
    %162 = math.exp %161 : vector<8x32xf32>
    %cst_39 = arith.constant 1.000000e+00 : f32
    %163 = vector.broadcast %cst_39 : f32 to vector<8x32xf32>
    %164 = arith.addf %163, %162 : vector<8x32xf32>
    %165 = arith.divf %163, %164 : vector<8x32xf32>
    %166 = arith.mulf %157, %136 : vector<8x32xf32>
    %167 = arith.mulf %151, %159 : vector<8x32xf32>
    %168 = arith.addf %166, %167 : vector<8x32xf32>
    %169 = math.tanh %168 : vector<8x32xf32>
    %170 = arith.mulf %165, %169 : vector<8x32xf32>
    %c5_i32 = arith.constant 5 : i32
    %c8_i32_40 = arith.constant 8 : i32
    %171 = arith.muli %c5_i32, %c8_i32_40 : i32
    %172 = tpu.assume_multiple %171, 8 : i32
    %173 = arith.index_cast %172 : i32 to index
    %c0_41 = arith.constant 0 : index
    %174 = vector.load %arg11[%173, %c0_41] : memref<64x128xf32, #tpu.memory_space<vmem>>, vector<8x128xf32>
    %175 = arith.truncf %170 : vector<8x32xf32> to vector<8x32xbf16>
    %cst_42 = arith.constant dense<0.000000e+00> : vector<8x128xf32>
    %176 = tpu.matmul %175, %8, %cst_42 {dimension_numbers = #tpu.dot_dimension_numbers<[1], [0], [0], [1], [0, 0, 1, 1], [], []>} : vector<8x32xbf16>, vector<32x128xbf16>, vector<8x128xf32> -> vector<8x128xf32>
    %177 = arith.addf %174, %176 : vector<8x128xf32>
    %178 = vector.extract_strided_slice %177 {offsets = [0, 0], sizes = [8, 32], strides = [1, 1]} : vector<8x128xf32> to vector<8x32xf32>
    %179 = arith.negf %178 : vector<8x32xf32>
    %180 = math.exp %179 : vector<8x32xf32>
    %cst_43 = arith.constant 1.000000e+00 : f32
    %181 = vector.broadcast %cst_43 : f32 to vector<8x32xf32>
    %182 = arith.addf %181, %180 : vector<8x32xf32>
    %183 = arith.divf %181, %182 : vector<8x32xf32>
    %184 = vector.extract_strided_slice %177 {offsets = [0, 32], sizes = [8, 32], strides = [1, 1]} : vector<8x128xf32> to vector<8x32xf32>
    %185 = arith.negf %184 : vector<8x32xf32>
    %186 = math.exp %185 : vector<8x32xf32>
    %cst_44 = arith.constant 1.000000e+00 : f32
    %187 = vector.broadcast %cst_44 : f32 to vector<8x32xf32>
    %188 = arith.addf %187, %186 : vector<8x32xf32>
    %189 = arith.divf %187, %188 : vector<8x32xf32>
    %190 = vector.extract_strided_slice %177 {offsets = [0, 64], sizes = [8, 32], strides = [1, 1]} : vector<8x128xf32> to vector<8x32xf32>
    %191 = math.tanh %190 : vector<8x32xf32>
    %192 = vector.extract_strided_slice %177 {offsets = [0, 96], sizes = [8, 32], strides = [1, 1]} : vector<8x128xf32> to vector<8x32xf32>
    %193 = arith.negf %192 : vector<8x32xf32>
    %194 = math.exp %193 : vector<8x32xf32>
    %cst_45 = arith.constant 1.000000e+00 : f32
    %195 = vector.broadcast %cst_45 : f32 to vector<8x32xf32>
    %196 = arith.addf %195, %194 : vector<8x32xf32>
    %197 = arith.divf %195, %196 : vector<8x32xf32>
    %198 = arith.mulf %189, %168 : vector<8x32xf32>
    %199 = arith.mulf %183, %191 : vector<8x32xf32>
    %200 = arith.addf %198, %199 : vector<8x32xf32>
    %201 = math.tanh %200 : vector<8x32xf32>
    %202 = arith.mulf %197, %201 : vector<8x32xf32>
    %c6_i32 = arith.constant 6 : i32
    %c8_i32_46 = arith.constant 8 : i32
    %203 = arith.muli %c6_i32, %c8_i32_46 : i32
    %204 = tpu.assume_multiple %203, 8 : i32
    %205 = arith.index_cast %204 : i32 to index
    %c0_47 = arith.constant 0 : index
    %206 = vector.load %arg11[%205, %c0_47] : memref<64x128xf32, #tpu.memory_space<vmem>>, vector<8x128xf32>
    %207 = arith.truncf %202 : vector<8x32xf32> to vector<8x32xbf16>
    %cst_48 = arith.constant dense<0.000000e+00> : vector<8x128xf32>
    %208 = tpu.matmul %207, %8, %cst_48 {dimension_numbers = #tpu.dot_dimension_numbers<[1], [0], [0], [1], [0, 0, 1, 1], [], []>} : vector<8x32xbf16>, vector<32x128xbf16>, vector<8x128xf32> -> vector<8x128xf32>
    %209 = arith.addf %206, %208 : vector<8x128xf32>
    %210 = vector.extract_strided_slice %209 {offsets = [0, 0], sizes = [8, 32], strides = [1, 1]} : vector<8x128xf32> to vector<8x32xf32>
    %211 = arith.negf %210 : vector<8x32xf32>
    %212 = math.exp %211 : vector<8x32xf32>
    %cst_49 = arith.constant 1.000000e+00 : f32
    %213 = vector.broadcast %cst_49 : f32 to vector<8x32xf32>
    %214 = arith.addf %213, %212 : vector<8x32xf32>
    %215 = arith.divf %213, %214 : vector<8x32xf32>
    %216 = vector.extract_strided_slice %209 {offsets = [0, 32], sizes = [8, 32], strides = [1, 1]} : vector<8x128xf32> to vector<8x32xf32>
    %217 = arith.negf %216 : vector<8x32xf32>
    %218 = math.exp %217 : vector<8x32xf32>
    %cst_50 = arith.constant 1.000000e+00 : f32
    %219 = vector.broadcast %cst_50 : f32 to vector<8x32xf32>
    %220 = arith.addf %219, %218 : vector<8x32xf32>
    %221 = arith.divf %219, %220 : vector<8x32xf32>
    %222 = vector.extract_strided_slice %209 {offsets = [0, 64], sizes = [8, 32], strides = [1, 1]} : vector<8x128xf32> to vector<8x32xf32>
    %223 = math.tanh %222 : vector<8x32xf32>
    %224 = vector.extract_strided_slice %209 {offsets = [0, 96], sizes = [8, 32], strides = [1, 1]} : vector<8x128xf32> to vector<8x32xf32>
    %225 = arith.negf %224 : vector<8x32xf32>
    %226 = math.exp %225 : vector<8x32xf32>
    %cst_51 = arith.constant 1.000000e+00 : f32
    %227 = vector.broadcast %cst_51 : f32 to vector<8x32xf32>
    %228 = arith.addf %227, %226 : vector<8x32xf32>
    %229 = arith.divf %227, %228 : vector<8x32xf32>
    %230 = arith.mulf %221, %200 : vector<8x32xf32>
    %231 = arith.mulf %215, %223 : vector<8x32xf32>
    %232 = arith.addf %230, %231 : vector<8x32xf32>
    %233 = math.tanh %232 : vector<8x32xf32>
    %234 = arith.mulf %229, %233 : vector<8x32xf32>
    %c7_i32 = arith.constant 7 : i32
    %c8_i32_52 = arith.constant 8 : i32
    %235 = arith.muli %c7_i32, %c8_i32_52 : i32
    %236 = tpu.assume_multiple %235, 8 : i32
    %237 = arith.index_cast %236 : i32 to index
    %c0_53 = arith.constant 0 : index
    %238 = vector.load %arg11[%237, %c0_53] : memref<64x128xf32, #tpu.memory_space<vmem>>, vector<8x128xf32>
    %239 = arith.truncf %234 : vector<8x32xf32> to vector<8x32xbf16>
    %cst_54 = arith.constant dense<0.000000e+00> : vector<8x128xf32>
    %240 = tpu.matmul %239, %8, %cst_54 {dimension_numbers = #tpu.dot_dimension_numbers<[1], [0], [0], [1], [0, 0, 1, 1], [], []>} : vector<8x32xbf16>, vector<32x128xbf16>, vector<8x128xf32> -> vector<8x128xf32>
    %241 = arith.addf %238, %240 : vector<8x128xf32>
    %242 = vector.extract_strided_slice %241 {offsets = [0, 0], sizes = [8, 32], strides = [1, 1]} : vector<8x128xf32> to vector<8x32xf32>
    %243 = arith.negf %242 : vector<8x32xf32>
    %244 = math.exp %243 : vector<8x32xf32>
    %cst_55 = arith.constant 1.000000e+00 : f32
    %245 = vector.broadcast %cst_55 : f32 to vector<8x32xf32>
    %246 = arith.addf %245, %244 : vector<8x32xf32>
    %247 = arith.divf %245, %246 : vector<8x32xf32>
    %248 = vector.extract_strided_slice %241 {offsets = [0, 32], sizes = [8, 32], strides = [1, 1]} : vector<8x128xf32> to vector<8x32xf32>
    %249 = arith.negf %248 : vector<8x32xf32>
    %250 = math.exp %249 : vector<8x32xf32>
    %cst_56 = arith.constant 1.000000e+00 : f32
    %251 = vector.broadcast %cst_56 : f32 to vector<8x32xf32>
    %252 = arith.addf %251, %250 : vector<8x32xf32>
    %253 = arith.divf %251, %252 : vector<8x32xf32>
    %254 = vector.extract_strided_slice %241 {offsets = [0, 64], sizes = [8, 32], strides = [1, 1]} : vector<8x128xf32> to vector<8x32xf32>
    %255 = math.tanh %254 : vector<8x32xf32>
    %256 = vector.extract_strided_slice %241 {offsets = [0, 96], sizes = [8, 32], strides = [1, 1]} : vector<8x128xf32> to vector<8x32xf32>
    %257 = arith.negf %256 : vector<8x32xf32>
    %258 = math.exp %257 : vector<8x32xf32>
    %cst_57 = arith.constant 1.000000e+00 : f32
    %259 = vector.broadcast %cst_57 : f32 to vector<8x32xf32>
    %260 = arith.addf %259, %258 : vector<8x32xf32>
    %261 = arith.divf %259, %260 : vector<8x32xf32>
    %262 = arith.mulf %253, %232 : vector<8x32xf32>
    %263 = arith.mulf %247, %255 : vector<8x32xf32>
    %264 = arith.addf %262, %263 : vector<8x32xf32>
    %265 = math.tanh %264 : vector<8x32xf32>
    %266 = arith.mulf %261, %265 : vector<8x32xf32>
    %c8_i32_58 = arith.constant 8 : i32
    %267 = arith.truncf %266 : vector<8x32xf32> to vector<8x32xbf16>
    %c0_59 = arith.constant 0 : index
    %c0_60 = arith.constant 0 : index
    %268 = vector.load %arg6[%c0_59, %c0_60] : memref<32x128xbf16, #tpu.memory_space<vmem>>, vector<32x128xbf16>
    %cst_61 = arith.constant dense<0.000000e+00> : vector<8x128xf32>
    %269 = tpu.matmul %267, %268, %cst_61 {dimension_numbers = #tpu.dot_dimension_numbers<[1], [0], [0], [1], [0, 0, 1, 1], [], []>} : vector<8x32xbf16>, vector<32x128xbf16>, vector<8x128xf32> -> vector<8x128xf32>
    %c0_62 = arith.constant 0 : index
    %c0_63 = arith.constant 0 : index
    %270 = vector.load %arg7[%c0_62, %c0_63] : memref<1x128xf32, #tpu.memory_space<vmem>>, vector<1x128xf32>
    %271 = vector.broadcast %270 : vector<1x128xf32> to vector<8x128xf32>
    %272 = arith.addf %269, %271 : vector<8x128xf32>
    %273 = tpu.concatenate %272, %272, %272, %272, %272, %272, %272 in 0 : vector<8x128xf32>, vector<8x128xf32>, vector<8x128xf32>, vector<8x128xf32>, vector<8x128xf32>, vector<8x128xf32>, vector<8x128xf32> -> vector<56x128xf32>
    %274 = tpu.concatenate %264, %264, %264, %264, %264, %264, %264 in 0 : vector<8x32xf32>, vector<8x32xf32>, vector<8x32xf32>, vector<8x32xf32>, vector<8x32xf32>, vector<8x32xf32>, vector<8x32xf32> -> vector<56x32xf32>
    %c0_64 = arith.constant 0 : index
    %c0_65 = arith.constant 0 : index
    %275 = vector.load %arg1[%c0_64, %c0_65] : memref<56x128xf32, #tpu.memory_space<vmem>>, vector<56x128xf32>
    %276 = arith.truncf %275 : vector<56x128xf32> to vector<56x128xbf16>
    %c0_66 = arith.constant 0 : index
    %c0_67 = arith.constant 0 : index
    %277 = vector.load %arg5[%c0_66, %c0_67] : memref<128x128xbf16, #tpu.memory_space<vmem>>, vector<128x128xbf16>
    %cst_68 = arith.constant dense<0.000000e+00> : vector<56x128xf32>
    %278 = tpu.matmul %276, %277, %cst_68 {dimension_numbers = #tpu.dot_dimension_numbers<[1], [0], [0], [1], [0, 0, 1, 1], [], []>} : vector<56x128xbf16>, vector<128x128xbf16>, vector<56x128xf32> -> vector<56x128xf32>
    %279 = arith.addf %278, %273 : vector<56x128xf32>
    %280 = vector.extract_strided_slice %279 {offsets = [0, 0], sizes = [56, 32], strides = [1, 1]} : vector<56x128xf32> to vector<56x32xf32>
    %281 = arith.negf %280 : vector<56x32xf32>
    %282 = math.exp %281 : vector<56x32xf32>
    %cst_69 = arith.constant 1.000000e+00 : f32
    %283 = vector.broadcast %cst_69 : f32 to vector<56x32xf32>
    %284 = arith.addf %283, %282 : vector<56x32xf32>
    %285 = arith.divf %283, %284 : vector<56x32xf32>
    %286 = vector.extract_strided_slice %279 {offsets = [0, 32], sizes = [56, 32], strides = [1, 1]} : vector<56x128xf32> to vector<56x32xf32>
    %287 = arith.negf %286 : vector<56x32xf32>
    %288 = math.exp %287 : vector<56x32xf32>
    %cst_70 = arith.constant 1.000000e+00 : f32
    %289 = vector.broadcast %cst_70 : f32 to vector<56x32xf32>
    %290 = arith.addf %289, %288 : vector<56x32xf32>
    %291 = arith.divf %289, %290 : vector<56x32xf32>
    %292 = vector.extract_strided_slice %279 {offsets = [0, 64], sizes = [56, 32], strides = [1, 1]} : vector<56x128xf32> to vector<56x32xf32>
    %293 = math.tanh %292 : vector<56x32xf32>
    %294 = vector.extract_strided_slice %279 {offsets = [0, 96], sizes = [56, 32], strides = [1, 1]} : vector<56x128xf32> to vector<56x32xf32>
    %295 = arith.negf %294 : vector<56x32xf32>
    %296 = math.exp %295 : vector<56x32xf32>
    %cst_71 = arith.constant 1.000000e+00 : f32
    %297 = vector.broadcast %cst_71 : f32 to vector<56x32xf32>
    %298 = arith.addf %297, %296 : vector<56x32xf32>
    %299 = arith.divf %297, %298 : vector<56x32xf32>
    %300 = arith.mulf %291, %274 : vector<56x32xf32>
    %301 = arith.mulf %285, %293 : vector<56x32xf32>
    %302 = arith.addf %300, %301 : vector<56x32xf32>
    %303 = math.tanh %302 : vector<56x32xf32>
    %304 = arith.mulf %299, %303 : vector<56x32xf32>
    %305 = arith.truncf %304 : vector<56x32xf32> to vector<56x32xbf16>
    %c0_72 = arith.constant 0 : index
    %c0_73 = arith.constant 0 : index
    %306 = vector.load %arg8[%c0_72, %c0_73] : memref<32x128xbf16, #tpu.memory_space<vmem>>, vector<32x128xbf16>
    %cst_74 = arith.constant dense<0.000000e+00> : vector<56x128xf32>
    %307 = tpu.matmul %305, %306, %cst_74 {dimension_numbers = #tpu.dot_dimension_numbers<[1], [0], [0], [1], [0, 0, 1, 1], [], []>} : vector<56x32xbf16>, vector<32x128xbf16>, vector<56x128xf32> -> vector<56x128xf32>
    %c0_75 = arith.constant 0 : index
    %c0_76 = arith.constant 0 : index
    %308 = vector.load %arg9[%c0_75, %c0_76] : memref<1x128xf32, #tpu.memory_space<vmem>>, vector<1x128xf32>
    %309 = vector.broadcast %308 : vector<1x128xf32> to vector<56x128xf32>
    %310 = arith.addf %307, %309 : vector<56x128xf32>
    %c0_77 = arith.constant 0 : index
    %c0_78 = arith.constant 0 : index
    %311 = vector.load %arg10[%c0_77, %c0_78] : memref<56x128xf32, #tpu.memory_space<vmem>>, vector<56x128xf32>
    tpu.vector_store %arg10[%c0_77, %c0_78], %310 {strides = array<i32>} : memref<56x128xf32, #tpu.memory_space<vmem>>, vector<56x128xf32>,
    return
  }
}

</mosaic_0001>

<llo_original>
// kernel: tpu_custom_call.1
$region0: #{tpu_custom_call.1}
  #allocation0 [shape = 'u32[]', space=smem, size = 0x4, offset = 0x4, fixed_abs, tag = 'smem constant byte address 0x4 - core index']
  #allocation1 [shape = 'u32[72,128]{1,0:T(1,128)}', space=vmem, size = 0x9000, scoped, tag = 'internal scratch']
  #allocation2 [shape = 'f32[64,128]{1,0:T(8,128)}', space=vmem, size = 0x8000, scoped, tag = 'scratch operand']
  %s0 = inlined_call_operand.hbm [shape: f32[64,128], index: 0, kind: input, shape index: {}]
  %s1 = inlined_call_operand.hbm [shape: f32[56,128], index: 1, kind: input, shape index: {}]
  %s2 = inlined_call_operand.hbm [shape: bf16[128,128], index: 2, kind: input, shape index: {}]
  %s3 = inlined_call_operand.hbm [shape: bf16[32,128], index: 3, kind: input, shape index: {}]
  %s4 = inlined_call_operand.vmem [shape: f32[1,128], index: 4, kind: input, shape index: {}]
  %s5 = inlined_call_operand.hbm [shape: bf16[128,128], index: 5, kind: input, shape index: {}]
  %s6 = inlined_call_operand.hbm [shape: bf16[32,128], index: 6, kind: input, shape index: {}]
  %s7 = inlined_call_operand.vmem [shape: f32[1,128], index: 7, kind: input, shape index: {}]
  %s8 = inlined_call_operand.hbm [shape: bf16[32,128], index: 8, kind: input, shape index: {}]
  %s9 = inlined_call_operand.vmem [shape: f32[1,128], index: 9, kind: input, shape index: {}]
  %s10 = inlined_call_operand.hbm [shape: f32[56,128], index: 10, kind: output, shape index: {}]
  %s11 = sld [smem:[#allocation0]]
  $region78: #{tpu_custom_call.1} parent=0
    _
  %s13 = ssub.s32 1, %s11
  %s14 = scalar_select 0, %s13, %s11
  $region1: #{tpu_custom_call.1} parent=0
    #allocation3 [shape = 'u8[32768]{0}', space=vmem, size = 0x8000, scoped, tag = 'input window, operand 0, single buffered']
    #allocation4 [shape = 's32[1]{0}', space=sflag, size = 0x4, scoped, tag = 'scoped memory for tpu_custom_call.1']
    #allocation5 [shape = 's32[1]{0}', space=sflag, size = 0x4, scoped, tag = 'scoped memory for tpu_custom_call.1']
    #allocation6 [shape = 'u8[28672]{0}', space=vmem, size = 0x7000, scoped, tag = 'input window, operand 1, single buffered']
    #allocation7 [shape = 's32[1]{0}', space=sflag, size = 0x4, scoped, tag = 'scoped memory for tpu_custom_call.1']
    #allocation8 [shape = 'u8[32768]{0}', space=vmem, size = 0x8000, scoped, tag = 'input window, operand 2, single buffered']
    #allocation9 [shape = 'u8[8192]{0}', space=vmem, size = 0x2000, scoped, tag = 'input window, operand 3, single buffered']
    #allocation10 [shape = 's32[1]{0}', space=sflag, size = 0x4, scoped, tag = 'scoped memory for tpu_custom_call.1']
    #allocation11 [shape = 'u8[32768]{0}', space=vmem, size = 0x8000, scoped, tag = 'input window, operand 5, single buffered']
    #allocation12 [shape = 'u8[8192]{0}', space=vmem, size = 0x2000, scoped, tag = 'input window, operand 6, single buffered']
    #allocation13 [shape = 's32[1]{0}', space=sflag, size = 0x4, scoped, tag = 'scoped memory for tpu_custom_call.1']
    #allocation14 [shape = 'u8[8192]{0}', space=vmem, size = 0x2000, scoped, tag = 'input window, operand 8, single buffered']
    #allocation15 [shape = 'u8[28672]{0}', space=vmem, size = 0x7000, scoped, tag = 'output window, operand 0, single buffered']
    %15 = vsyncpa [#allocation4], 0
    %16 = vsyncpa [#allocation7], 0
    %17 = vsyncpa [#allocation10], 0
    %18 = vsyncpa [#allocation13], 0
    %19 = vsyncpa [#allocation5], 0
    // Predicated region
    $region2: #{tpu_custom_call.1} parent=1 // pred_check
      _
    $region3: #{tpu_custom_call.1} parent=1 // pred_check_branch
      %21 = sbr.rel (0) target = $region5
    $region4: #{tpu_custom_call.1} parent=1 // pred_region
      %23 = vsyncadd [#allocation4], 0
      %s24 = sshll.u32 %s0, 4
      %s25 = int_to_ptr.hbm [resolvable:$true] %s24
      %s26 = sshll.u32 [#allocation3], 4
      %s27 = int_to_ptr.vmem [resolvable:$true] %s26
      %32 = dma.hbm_to_vmem [thread:$0]  %s25, 1024, %s27, [#allocation4], 128, 128, 8
    $region5: #{tpu_custom_call.1} parent=1 // pred_fallthru
      _
    // Predicated region
    $region6: #{tpu_custom_call.1} parent=1 // pred_check
      _
    $region7: #{tpu_custom_call.1} parent=1 // pred_check_branch
      %34 = sbr.rel (0) target = $region9
    $region8: #{tpu_custom_call.1} parent=1 // pred_region
      %36 = vsyncadd [#allocation7], 0
      %s37 = sshll.u32 %s1, 4
      %s38 = int_to_ptr.hbm [resolvable:$true] %s37
      %s39 = sshll.u32 [#allocation6], 4
      %s40 = int_to_ptr.vmem [resolvable:$true] %s39
      %45 = dma.hbm_to_vmem [thread:$0]  %s38, 896, %s40, [#allocation7], 128, 128, 8
    $region9: #{tpu_custom_call.1} parent=1 // pred_fallthru
      _
    // Predicated region
    $region10: #{tpu_custom_call.1} parent=1 // pred_check
      _
    $region11: #{tpu_custom_call.1} parent=1 // pred_check_branch
      %47 = sbr.rel (0) target = $region13
    $region12: #{tpu_custom_call.1} parent=1 // pred_region
      %49 = vsyncadd [#allocation7], 0
      %s50 = sshll.u32 %s2, 4
      %s51 = int_to_ptr.hbm [resolvable:$true] %s50
      %s52 = sshll.u32 [#allocation8], 4
      %s53 = int_to_ptr.vmem [resolvable:$true] %s52
      %58 = dma.hbm_to_vmem [thread:$0]  %s51, 1024, %s53, [#allocation7], 64, 64, 4
    $region13: #{tpu_custom_call.1} parent=1 // pred_fallthru
      _
    // Predicated region
    $region14: #{tpu_custom_call.1} parent=1 // pred_check
      _
    $region15: #{tpu_custom_call.1} parent=1 // pred_check_branch
      %60 = sbr.rel (0) target = $region17
    $region16: #{tpu_custom_call.1} parent=1 // pred_region
      %62 = vsyncadd [#allocation10], 0
      %s63 = sshll.u32 %s3, 4
      %s64 = int_to_ptr.hbm [resolvable:$true] %s63
      %s65 = sshll.u32 [#allocation9], 4
      %s66 = int_to_ptr.vmem [resolvable:$true] %s65
      %71 = dma.hbm_to_vmem [thread:$0]  %s64, 256, %s66, [#allocation10], 64, 64, 4
    $region17: #{tpu_custom_call.1} parent=1 // pred_fallthru
      _
    // Predicated region
    $region18: #{tpu_custom_call.1} parent=1 // pred_check
      _
    $region19: #{tpu_custom_call.1} parent=1 // pred_check_branch
      %73 = sbr.rel (0) target = $region21
    $region20: #{tpu_custom_call.1} parent=1 // pred_region
      _
    $region21: #{tpu_custom_call.1} parent=1 // pred_fallthru
      _
    // Predicated region
    $region22: #{tpu_custom_call.1} parent=1 // pred_check
      _
    $region23: #{tpu_custom_call.1} parent=1 // pred_check_branch
      %75 = sbr.rel (0) target = $region25
    $region24: #{tpu_custom_call.1} parent=1 // pred_region
      %77 = vsyncadd [#allocation10], 0
      %s78 = sshll.u32 %s5, 4
      %s79 = int_to_ptr.hbm [resolvable:$true] %s78
      %s80 = sshll.u32 [#allocation11], 4
      %s81 = int_to_ptr.vmem [resolvable:$true] %s80
      %86 = dma.hbm_to_vmem [thread:$0]  %s79, 1024, %s81, [#allocation10], 64, 64, 4
    $region25: #{tpu_custom_call.1} parent=1 // pred_fallthru
      _
    // Predicated region
    $region26: #{tpu_custom_call.1} parent=1 // pred_check
      _
    $region27: #{tpu_custom_call.1} parent=1 // pred_check_branch
      %88 = sbr.rel (0) target = $region29
    $region28: #{tpu_custom_call.1} parent=1 // pred_region
      %90 = vsyncadd [#allocation13], 0
      %s91 = sshll.u32 %s6, 4
      %s92 = int_to_ptr.hbm [resolvable:$true] %s91
      %s93 = sshll.u32 [#allocation12], 4
      %s94 = int_to_ptr.vmem [resolvable:$true] %s93
      %99 = dma.hbm_to_vmem [thread:$0]  %s92, 256, %s94, [#allocation13], 64, 64, 4
    $region29: #{tpu_custom_call.1} parent=1 // pred_fallthru
      _
    // Predicated region
    $region30: #{tpu_custom_call.1} parent=1 // pred_check
      _
    $region31: #{tpu_custom_call.1} parent=1 // pred_check_branch
      %101 = sbr.rel (0) target = $region33
    $region32: #{tpu_custom_call.1} parent=1 // pred_region
      _
    $region33: #{tpu_custom_call.1} parent=1 // pred_fallthru
      _
    // Predicated region
    $region34: #{tpu_custom_call.1} parent=1 // pred_check
      _
    $region35: #{tpu_custom_call.1} parent=1 // pred_check_branch
      %103 = sbr.rel (0) target = $region37
    $region36: #{tpu_custom_call.1} parent=1 // pred_region
      %105 = vsyncadd [#allocation13], 0
      %s106 = sshll.u32 %s8, 4
      %s107 = int_to_ptr.hbm [resolvable:$true] %s106
      %s108 = sshll.u32 [#allocation14], 4
      %s109 = int_to_ptr.vmem [resolvable:$true] %s108
      %114 = dma.hbm_to_vmem [thread:$0]  %s107, 256, %s109, [#allocation13], 64, 64, 4
    $region37: #{tpu_custom_call.1} parent=1 // pred_fallthru
      _
    // Predicated region
    $region38: #{tpu_custom_call.1} parent=1 // pred_check
      _
    $region39: #{tpu_custom_call.1} parent=1 // pred_check_branch
      %116 = sbr.rel (0) target = $region41
    $region40: #{tpu_custom_call.1} parent=1 // pred_region
      _
    $region41: #{tpu_custom_call.1} parent=1 // pred_fallthru
      _
    // Predicated region
    $region42: #{tpu_custom_call.1} parent=1 // pred_check
      _
    $region43: #{tpu_custom_call.1} parent=1 // pred_check_branch
      %118 = sbr.rel (0) target = $region45
    $region44: #{tpu_custom_call.1} parent=1 // pred_region
      %120 = dma.done [#allocation4], 1024
    $region45: #{tpu_custom_call.1} parent=1 // pred_fallthru
      _
    // Predicated region
    $region46: #{tpu_custom_call.1} parent=1 // pred_check
      _
    $region47: #{tpu_custom_call.1} parent=1 // pred_check_branch
      %122 = sbr.rel (0) target = $region49
    $region48: #{tpu_custom_call.1} parent=1 // pred_region
      %124 = dma.done [#allocation7], 896
    $region49: #{tpu_custom_call.1} parent=1 // pred_fallthru
      _
    // Predicated region
    $region50: #{tpu_custom_call.1} parent=1 // pred_check
      _
    $region51: #{tpu_custom_call.1} parent=1 // pred_check_branch
      %126 = sbr.rel (0) target = $region53
    $region52: #{tpu_custom_call.1} parent=1 // pred_region
      %128 = dma.done [#allocation7], 1024
    $region53: #{tpu_custom_call.1} parent=1 // pred_fallthru
      _
    // Predicated region
    $region54: #{tpu_custom_call.1} parent=1 // pred_check
      _
    $region55: #{tpu_custom_call.1} parent=1 // pred_check_branch
      %130 = sbr.rel (0) target = $region57
    $region56: #{tpu_custom_call.1} parent=1 // pred_region
      %132 = dma.done [#allocation10], 256
    $region57: #{tpu_custom_call.1} parent=1 // pred_fallthru
      _
    // Predicated region
    $region58: #{tpu_custom_call.1} parent=1 // pred_check
      _
    $region59: #{tpu_custom_call.1} parent=1 // pred_check_branch
      %134 = sbr.rel (0) target = $region61
    $region60: #{tpu_custom_call.1} parent=1 // pred_region
      %136 = dma.done [#allocation10], 1024
    $region61: #{tpu_custom_call.1} parent=1 // pred_fallthru
      _
    // Predicated region
    $region62: #{tpu_custom_call.1} parent=1 // pred_check
      _
    $region63: #{tpu_custom_call.1} parent=1 // pred_check_branch
      %138 = sbr.rel (0) target = $region65
    $region64: #{tpu_custom_call.1} parent=1 // pred_region
      %140 = dma.done [#allocation13], 256
    $region65: #{tpu_custom_call.1} parent=1 // pred_fallthru
      _
    // Predicated region
    $region66: #{tpu_custom_call.1} parent=1 // pred_check
      _
    $region67: #{tpu_custom_call.1} parent=1 // pred_check_branch
      %142 = sbr.rel (0) target = $region69
    $region68: #{tpu_custom_call.1} parent=1 // pred_region
      %144 = dma.done [#allocation13], 256
    $region69: #{tpu_custom_call.1} parent=1 // pred_fallthru
      _
    %v146 = vld [vmem:[#allocation3] sm:$0xff]
    %v147 = vld [vmem:[#allocation3 + $0x8] sm:$0xff]
    %v148 = vld [vmem:[#allocation3 + $0x10] sm:$0xff]
    %v149 = vld [vmem:[#allocation3 + $0x18] sm:$0xff]
    %v150 = vld [vmem:[#allocation3 + $0x20] sm:$0xff]
    %v151 = vld [vmem:[#allocation3 + $0x28] sm:$0xff]
    %v152 = vld [vmem:[#allocation3 + $0x30] sm:$0xff]
    %v153 = vld [vmem:[#allocation3 + $0x38] sm:$0xff]
    %v154 = vpack.c.bf16 %v147, %v146
    %v155 = vpack.c.bf16 %v149, %v148
    %v156 = vpack.c.bf16 %v151, %v150
    %v157 = vpack.c.bf16 %v153, %v152
    %v158 = vld [vmem:[#allocation8] sm:$0xf]
    %v159 = vld [vmem:[#allocation8 + $0x4] sm:$0xf]
    %v160 = vld [vmem:[#allocation8 + $0x8] sm:$0xf]
    %v161 = vld [vmem:[#allocation8 + $0xc] sm:$0xf]
    %v162 = vld [vmem:[#allocation8 + $0x10] sm:$0xf]
    %v163 = vld [vmem:[#allocation8 + $0x14] sm:$0xf]
    %v164 = vld [vmem:[#allocation8 + $0x18] sm:$0xf]
    %v165 = vld [vmem:[#allocation8 + $0x1c] sm:$0xf]
    %v166 = vld [vmem:[#allocation8 + $0x20] sm:$0xf]
    %v167 = vld [vmem:[#allocation8 + $0x24] sm:$0xf]
    %v168 = vld [vmem:[#allocation8 + $0x28] sm:$0xf]
    %v169 = vld [vmem:[#allocation8 + $0x2c] sm:$0xf]
    %v170 = vld [vmem:[#allocation8 + $0x30] sm:$0xf]
    %v171 = vld [vmem:[#allocation8 + $0x34] sm:$0xf]
    %v172 = vld [vmem:[#allocation8 + $0x38] sm:$0xf]
    %v173 = vld [vmem:[#allocation8 + $0x3c] sm:$0xf]
    %v174 = vld [vmem:[%s4] sm:$0x1]
    %v176 = vperm.slane %v174, 0
    %v194 = vunpack.c.l.b16 %v158
    %v195 = vunpack.c.l.b16 %v159
    %v196 = vunpack.c.l.b16 %v160
    %v197 = vunpack.c.l.b16 %v161
    %v198 = vunpack.c.l.b16 %v162
    %v199 = vunpack.c.l.b16 %v163
    %v200 = vunpack.c.l.b16 %v164
    %v201 = vunpack.c.l.b16 %v165
    %v202 = vunpack.c.l.b16 %v166
    %v203 = vunpack.c.l.b16 %v167
    %v204 = vunpack.c.l.b16 %v168
    %v205 = vunpack.c.l.b16 %v169
    %v206 = vunpack.c.l.b16 %v170
    %v207 = vunpack.c.l.b16 %v171
    %v208 = vunpack.c.l.b16 %v172
    %v209 = vunpack.c.l.b16 %v173
    %v210 = vpack.c.b16 %v195, %v194
    %v211 = vpack.c.b16 %v197, %v196
    %v212 = vpack.c.b16 %v199, %v198
    %v213 = vpack.c.b16 %v201, %v200
    %v214 = vpack.c.b16 %v203, %v202
    %v215 = vpack.c.b16 %v205, %v204
    %v216 = vpack.c.b16 %v207, %v206
    %v217 = vpack.c.b16 %v209, %v208
    %226 = vmatpush.bf16.msra.mxu0 %v217
    %227 = vmatpush.bf16.msra.mxu0 %v216
    %228 = vmatpush.bf16.msra.mxu0 %v215
    %229 = vmatpush.bf16.msra.mxu0 %v214
    %230 = vmatpush.bf16.msra.mxu0 %v213
    %231 = vmatpush.bf16.msra.mxu0 %v212
    %232 = vmatpush.bf16.msra.mxu0 %v211
    %233 = vmatpush.bf16.msra.mxu0 %v210
    %234 = vmatmul.bf16.gmra.mxu0 %v154
    %v235 = vpop.f32.mrf.mxu0
    %v236 = vadd.f32 %v176, %v235
    %v237 = vpop.f32.mrf.mxu0
    %v238 = vadd.f32 %v176, %v237
    %239 = vmatmul.bf16.gmra.mxu0 %v155
    %v240 = vpop.f32.mrf.mxu0
    %v241 = vadd.f32 %v176, %v240
    %v242 = vpop.f32.mrf.mxu0
    %v243 = vadd.f32 %v176, %v242
    %244 = vmatmul.bf16.gmra.mxu0 %v156
    %v245 = vpop.f32.mrf.mxu0
    %v246 = vadd.f32 %v176, %v245
    %v247 = vpop.f32.mrf.mxu0
    %v248 = vadd.f32 %v176, %v247
    %249 = vmatmul.bf16.gmra.mxu0 %v157
    %v250 = vpop.f32.mrf.mxu0
    %v251 = vadd.f32 %v176, %v250
    %v252 = vpop.f32.mrf.mxu0
    %v253 = vadd.f32 %v176, %v252
    %254 = vdwg.mxu0
    %255 = vst [vmem:[#allocation2] sm:$0xff] %v236
    %256 = vst [vmem:[#allocation2 + $0x8] sm:$0xff] %v238
    %257 = vst [vmem:[#allocation2 + $0x10] sm:$0xff] %v241
    %258 = vst [vmem:[#allocation2 + $0x18] sm:$0xff] %v243
    %259 = vst [vmem:[#allocation2 + $0x20] sm:$0xff] %v246
    %260 = vst [vmem:[#allocation2 + $0x28] sm:$0xff] %v248
    %261 = vst [vmem:[#allocation2 + $0x30] sm:$0xff] %v251
    %262 = vst [vmem:[#allocation2 + $0x38] sm:$0xff] %v253
    %v263 = vld [vmem:[#allocation9] sm:$0xf]
    %v264 = vld [vmem:[#allocation9 + $0x4] sm:$0xf]
    %v265 = vld [vmem:[#allocation9 + $0x8] sm:$0xf]
    %v266 = vld [vmem:[#allocation9 + $0xc] sm:$0xf]
    %v267 = vld [vmem:[#allocation2] sm:$0xff]
    %v272 = vunpack.c.l.b16 %v263
    %v273 = vunpack.c.l.b16 %v264
    %v274 = vunpack.c.l.b16 %v265
    %v275 = vunpack.c.l.b16 %v266
    %v276 = vpack.c.b16 %v273, %v272
    %v277 = vpack.c.b16 %v275, %v274
    %vm280 = vcmask 261120
    %v282 = vsel %vm280, 0, 0
    %284 = vmatpush.bf16.msra.mxu0 0
    %285 = vmatpush.bf16.msra.mxu0 0
    %286 = vmatpush.bf16.msra.mxu0 0
    %287 = vmatpush.bf16.msra.mxu0 0
    %288 = vmatpush.bf16.msra.mxu0 0
    %289 = vmatpush.bf16.msra.mxu0 0
    %290 = vmatpush.bf16.msra.mxu0 %v277
    %291 = vmatpush.bf16.msra.mxu0 %v276
    %292 = vmatmul.bf16.gmra.mxu0 %v282
    %v293 = vpop.f32.mrf.mxu0
    %v294 = vadd.f32 0.0, %v293
    %v295 = vpop.f32.mrf.mxu0
    %296 = vdwg.mxu0
    %v297 = vadd.f32 %v267, %v294
    %v298 = vxor.u32 %v297, 2147483648
    %v299 = vmul.f32 %v298, 1.442695
    %v300 = vpow.pop %v299
    %v301 = vadd.f32 %v300, 1.0
    %v302 = vrcp.pop %v301
    %v303 = vmul.f32 %v301, %v302
    %v304 = vsub.f32 1.0, %v303
    %v305 = vmul.f32 %v302, %v304
    %v306 = vadd.f32 %v302, %v305
    %vm307 = vweird.f32 %v301
    %vm308 = vweird.f32 %v302
    %vm309 = vmor %vm307, %vm308
    %v310 = vsel %vm309, %v302, %v306
    %v311 = vand.u32 2147483647, %v301
    %vm312 = vcmp.eq.f32.partialorder %v311, 8.507059e+37
    %v313 = vand.u32 %v301, 2147483648
    %v314 = vor.u32 1.1754944e-38, %v313
    %v315 = vsel %vm312, %v314, %v310
    %v316 = vmul.f32 1.0, %v315
    %v317 = vtanh.pop %v297
    %v318 = vmul.f32 %v316, 0.0
    %320 = vrot.lane.b32.xlu0 %v317, 64
    %v321 = vpop.permute.xlu0 %320
    %v323 = vmul.f32 %v316, %v321
    %325 = vrot.lane.b32.xlu0 %v323, 32
    %v326 = vpop.permute.xlu0 %325
    %v328 = vadd.f32 %v318, %v326
    %v329 = vtanh.pop %v328
    %331 = vrot.lane.b32.xlu0 %v329, 64
    %v332 = vpop.permute.xlu0 %331
    %v334 = vmul.f32 %v316, %v332
    %s335 = scalar_lea.vmem [#allocation2], 8
    %v336 = vld [vmem:[%s335] sm:$0xff]
    %v337 = vpack.c.bf16 %v334, %v334
    %339 = vrot.lane.b32.xlu0 %v337, 32
    %v340 = vpop.permute.xlu0 %339
    %v342 = vsel %vm280, %v340, 0
    %344 = vmatpush.bf16.msra.mxu0 0
    %345 = vmatpush.bf16.msra.mxu0 0
    %346 = vmatpush.bf16.msra.mxu0 0
    %347 = vmatpush.bf16.msra.mxu0 0
    %348 = vmatpush.bf16.msra.mxu0 0
    %349 = vmatpush.bf16.msra.mxu0 0
    %350 = vmatpush.bf16.msra.mxu0 %v277
    %351 = vmatpush.bf16.msra.mxu0 %v276
    %352 = vmatmul.bf16.gmra.mxu0 %v342
    %v353 = vpop.f32.mrf.mxu0
    %v354 = vadd.f32 0.0, %v353
    %v355 = vpop.f32.mrf.mxu0
    %356 = vdwg.mxu0
    %v357 = vadd.f32 %v336, %v354
    %v358 = vxor.u32 %v357, 2147483648
    %v359 = vmul.f32 %v358, 1.442695
    %v360 = vpow.pop %v359
    %v361 = vadd.f32 %v360, 1.0
    %v362 = vrcp.pop %v361
    %v363 = vmul.f32 %v361, %v362
    %v364 = vsub.f32 1.0, %v363
    %v365 = vmul.f32 %v362, %v364
    %v366 = vadd.f32 %v362, %v365
    %vm367 = vweird.f32 %v361
    %vm368 = vweird.f32 %v362
    %vm369 = vmor %vm367, %vm368
    %v370 = vsel %vm369, %v362, %v366
    %v371 = vand.u32 2147483647, %v361
    %vm372 = vcmp.eq.f32.partialorder %v371, 8.507059e+37
    %v373 = vand.u32 %v361, 2147483648
    %v374 = vor.u32 1.1754944e-38, %v373
    %v375 = vsel %vm372, %v374, %v370
    %v376 = vmul.f32 1.0, %v375
    %v377 = vtanh.pop %v357
    %v378 = vmul.f32 %v376, %v328
    %380 = vrot.lane.b32.xlu0 %v377, 64
    %v381 = vpop.permute.xlu0 %380
    %v383 = vmul.f32 %v376, %v381
    %385 = vrot.lane.b32.xlu0 %v383, 32
    %v386 = vpop.permute.xlu0 %385
    %v388 = vadd.f32 %v378, %v386
    %v389 = vtanh.pop %v388
    %391 = vrot.lane.b32.xlu0 %v389, 64
    %v392 = vpop.permute.xlu0 %391
    %v394 = vmul.f32 %v376, %v392
    %s395 = scalar_lea.vmem [#allocation2], 16
    %v396 = vld [vmem:[%s395] sm:$0xff]
    %v397 = vpack.c.bf16 %v394, %v394
    %399 = vrot.lane.b32.xlu0 %v397, 32
    %v400 = vpop.permute.xlu0 %399
    %v402 = vsel %vm280, %v400, 0
    %404 = vmatpush.bf16.msra.mxu0 0
    %405 = vmatpush.bf16.msra.mxu0 0
    %406 = vmatpush.bf16.msra.mxu0 0
    %407 = vmatpush.bf16.msra.mxu0 0
    %408 = vmatpush.bf16.msra.mxu0 0
    %409 = vmatpush.bf16.msra.mxu0 0
    %410 = vmatpush.bf16.msra.mxu0 %v277
    %411 = vmatpush.bf16.msra.mxu0 %v276
    %412 = vmatmul.bf16.gmra.mxu0 %v402
    %v413 = vpop.f32.mrf.mxu0
    %v414 = vadd.f32 0.0, %v413
    %v415 = vpop.f32.mrf.mxu0
    %416 = vdwg.mxu0
    %v417 = vadd.f32 %v396, %v414
    %v418 = vxor.u32 %v417, 2147483648
    %v419 = vmul.f32 %v418, 1.442695
    %v420 = vpow.pop %v419
    %v421 = vadd.f32 %v420, 1.0
    %v422 = vrcp.pop %v421
    %v423 = vmul.f32 %v421, %v422
    %v424 = vsub.f32 1.0, %v423
    %v425 = vmul.f32 %v422, %v424
    %v426 = vadd.f32 %v422, %v425
    %vm427 = vweird.f32 %v421
    %vm428 = vweird.f32 %v422
    %vm429 = vmor %vm427, %vm428
    %v430 = vsel %vm429, %v422, %v426
    %v431 = vand.u32 2147483647, %v421
    %vm432 = vcmp.eq.f32.partialorder %v431, 8.507059e+37
    %v433 = vand.u32 %v421, 2147483648
    %v434 = vor.u32 1.1754944e-38, %v433
    %v435 = vsel %vm432, %v434, %v430
    %v436 = vmul.f32 1.0, %v435
    %v437 = vtanh.pop %v417
    %v438 = vmul.f32 %v436, %v388
    %440 = vrot.lane.b32.xlu0 %v437, 64
    %v441 = vpop.permute.xlu0 %440
    %v443 = vmul.f32 %v436, %v441
    %445 = vrot.lane.b32.xlu0 %v443, 32
    %v446 = vpop.permute.xlu0 %445
    %v448 = vadd.f32 %v438, %v446
    %v449 = vtanh.pop %v448
    %451 = vrot.lane.b32.xlu0 %v449, 64
    %v452 = vpop.permute.xlu0 %451
    %v454 = vmul.f32 %v436, %v452
    %s455 = scalar_lea.vmem [#allocation2], 24
    %v456 = vld [vmem:[%s455] sm:$0xff]
    %v457 = vpack.c.bf16 %v454, %v454
    %459 = vrot.lane.b32.xlu0 %v457, 32
    %v460 = vpop.permute.xlu0 %459
    %v462 = vsel %vm280, %v460, 0
    %464 = vmatpush.bf16.msra.mxu0 0
    %465 = vmatpush.bf16.msra.mxu0 0
    %466 = vmatpush.bf16.msra.mxu0 0
    %467 = vmatpush.bf16.msra.mxu0 0
    %468 = vmatpush.bf16.msra.mxu0 0
    %469 = vmatpush.bf16.msra.mxu0 0
    %470 = vmatpush.bf16.msra.mxu0 %v277
    %471 = vmatpush.bf16.msra.mxu0 %v276
    %472 = vmatmul.bf16.gmra.mxu0 %v462
    %v473 = vpop.f32.mrf.mxu0
    %v474 = vadd.f32 0.0, %v473
    %v475 = vpop.f32.mrf.mxu0
    %476 = vdwg.mxu0
    %v477 = vadd.f32 %v456, %v474
    %v478 = vxor.u32 %v477, 2147483648
    %v479 = vmul.f32 %v478, 1.442695
    %v480 = vpow.pop %v479
    %v481 = vadd.f32 %v480, 1.0
    %v482 = vrcp.pop %v481
    %v483 = vmul.f32 %v481, %v482
    %v484 = vsub.f32 1.0, %v483
    %v485 = vmul.f32 %v482, %v484
    %v486 = vadd.f32 %v482, %v485
    %vm487 = vweird.f32 %v481
    %vm488 = vweird.f32 %v482
    %vm489 = vmor %vm487, %vm488
    %v490 = vsel %vm489, %v482, %v486
    %v491 = vand.u32 2147483647, %v481
    %vm492 = vcmp.eq.f32.partialorder %v491, 8.507059e+37
    %v493 = vand.u32 %v481, 2147483648
    %v494 = vor.u32 1.1754944e-38, %v493
    %v495 = vsel %vm492, %v494, %v490
    %v496 = vmul.f32 1.0, %v495
    %v497 = vtanh.pop %v477
    %v498 = vmul.f32 %v496, %v448
    %500 = vrot.lane.b32.xlu0 %v497, 64
    %v501 = vpop.permute.xlu0 %500
    %v503 = vmul.f32 %v496, %v501
    %505 = vrot.lane.b32.xlu0 %v503, 32
    %v506 = vpop.permute.xlu0 %505
    %v508 = vadd.f32 %v498, %v506
    %v509 = vtanh.pop %v508
    %511 = vrot.lane.b32.xlu0 %v509, 64
    %v512 = vpop.permute.xlu0 %511
    %v514 = vmul.f32 %v496, %v512
    %s515 = scalar_lea.vmem [#allocation2], 32
    %v516 = vld [vmem:[%s515] sm:$0xff]
    %v517 = vpack.c.bf16 %v514, %v514
    %519 = vrot.lane.b32.xlu0 %v517, 32
    %v520 = vpop.permute.xlu0 %519
    %v522 = vsel %vm280, %v520, 0
    %524 = vmatpush.bf16.msra.mxu0 0
    %525 = vmatpush.bf16.msra.mxu0 0
    %526 = vmatpush.bf16.msra.mxu0 0
    %527 = vmatpush.bf16.msra.mxu0 0
    %528 = vmatpush.bf16.msra.mxu0 0
    %529 = vmatpush.bf16.msra.mxu0 0
    %530 = vmatpush.bf16.msra.mxu0 %v277
    %531 = vmatpush.bf16.msra.mxu0 %v276
    %532 = vmatmul.bf16.gmra.mxu0 %v522
    %v533 = vpop.f32.mrf.mxu0
    %v534 = vadd.f32 0.0, %v533
    %v535 = vpop.f32.mrf.mxu0
    %536 = vdwg.mxu0
    %v537 = vadd.f32 %v516, %v534
    %v538 = vxor.u32 %v537, 2147483648
    %v539 = vmul.f32 %v538, 1.442695
    %v540 = vpow.pop %v539
    %v541 = vadd.f32 %v540, 1.0
    %v542 = vrcp.pop %v541
    %v543 = vmul.f32 %v541, %v542
    %v544 = vsub.f32 1.0, %v543
    %v545 = vmul.f32 %v542, %v544
    %v546 = vadd.f32 %v542, %v545
    %vm547 = vweird.f32 %v541
    %vm548 = vweird.f32 %v542
    %vm549 = vmor %vm547, %vm548
    %v550 = vsel %vm549, %v542, %v546
    %v551 = vand.u32 2147483647, %v541
    %vm552 = vcmp.eq.f32.partialorder %v551, 8.507059e+37
    %v553 = vand.u32 %v541, 2147483648
    %v554 = vor.u32 1.1754944e-38, %v553
    %v555 = vsel %vm552, %v554, %v550
    %v556 = vmul.f32 1.0, %v555
    %v557 = vtanh.pop %v537
    %v558 = vmul.f32 %v556, %v508
    %560 = vrot.lane.b32.xlu0 %v557, 64
    %v561 = vpop.permute.xlu0 %560
    %v563 = vmul.f32 %v556, %v561
    %565 = vrot.lane.b32.xlu0 %v563, 32
    %v566 = vpop.permute.xlu0 %565
    %v568 = vadd.f32 %v558, %v566
    %v569 = vtanh.pop %v568
    %571 = vrot.lane.b32.xlu0 %v569, 64
    %v572 = vpop.permute.xlu0 %571
    %v574 = vmul.f32 %v556, %v572
    %s575 = scalar_lea.vmem [#allocation2], 40
    %v576 = vld [vmem:[%s575] sm:$0xff]
    %v577 = vpack.c.bf16 %v574, %v574
    %579 = vrot.lane.b32.xlu0 %v577, 32
    %v580 = vpop.permute.xlu0 %579
    %v582 = vsel %vm280, %v580, 0
    %584 = vmatpush.bf16.msra.mxu0 0
    %585 = vmatpush.bf16.msra.mxu0 0
    %586 = vmatpush.bf16.msra.mxu0 0
    %587 = vmatpush.bf16.msra.mxu0 0
    %588 = vmatpush.bf16.msra.mxu0 0
    %589 = vmatpush.bf16.msra.mxu0 0
    %590 = vmatpush.bf16.msra.mxu0 %v277
    %591 = vmatpush.bf16.msra.mxu0 %v276
    %592 = vmatmul.bf16.gmra.mxu0 %v582
    %v593 = vpop.f32.mrf.mxu0
    %v594 = vadd.f32 0.0, %v593
    %v595 = vpop.f32.mrf.mxu0
    %596 = vdwg.mxu0
    %v597 = vadd.f32 %v576, %v594
    %v598 = vxor.u32 %v597, 2147483648
    %v599 = vmul.f32 %v598, 1.442695
    %v600 = vpow.pop %v599
    %v601 = vadd.f32 %v600, 1.0
    %v602 = vrcp.pop %v601
    %v603 = vmul.f32 %v601, %v602
    %v604 = vsub.f32 1.0, %v603
    %v605 = vmul.f32 %v602, %v604
    %v606 = vadd.f32 %v602, %v605
    %vm607 = vweird.f32 %v601
    %vm608 = vweird.f32 %v602
    %vm609 = vmor %vm607, %vm608
    %v610 = vsel %vm609, %v602, %v606
    %v611 = vand.u32 2147483647, %v601
    %vm612 = vcmp.eq.f32.partialorder %v611, 8.507059e+37
    %v613 = vand.u32 %v601, 2147483648
    %v614 = vor.u32 1.1754944e-38, %v613
    %v615 = vsel %vm612, %v614, %v610
    %v616 = vmul.f32 1.0, %v615
    %v617 = vtanh.pop %v597
    %v618 = vmul.f32 %v616, %v568
    %620 = vrot.lane.b32.xlu0 %v617, 64
    %v621 = vpop.permute.xlu0 %620
    %v623 = vmul.f32 %v616, %v621
    %625 = vrot.lane.b32.xlu0 %v623, 32
    %v626 = vpop.permute.xlu0 %625
    %v628 = vadd.f32 %v618, %v626
    %v629 = vtanh.pop %v628
    %631 = vrot.lane.b32.xlu0 %v629, 64
    %v632 = vpop.permute.xlu0 %631
    %v634 = vmul.f32 %v616, %v632
    %s635 = scalar_lea.vmem [#allocation2], 48
    %v636 = vld [vmem:[%s635] sm:$0xff]
    %v637 = vpack.c.bf16 %v634, %v634
    %639 = vrot.lane.b32.xlu0 %v637, 32
    %v640 = vpop.permute.xlu0 %639
    %v642 = vsel %vm280, %v640, 0
    %644 = vmatpush.bf16.msra.mxu0 0
    %645 = vmatpush.bf16.msra.mxu0 0
    %646 = vmatpush.bf16.msra.mxu0 0
    %647 = vmatpush.bf16.msra.mxu0 0
    %648 = vmatpush.bf16.msra.mxu0 0
    %649 = vmatpush.bf16.msra.mxu0 0
    %650 = vmatpush.bf16.msra.mxu0 %v277
    %651 = vmatpush.bf16.msra.mxu0 %v276
    %652 = vmatmul.bf16.gmra.mxu0 %v642
    %v653 = vpop.f32.mrf.mxu0
    %v654 = vadd.f32 0.0, %v653
    %v655 = vpop.f32.mrf.mxu0
    %656 = vdwg.mxu0
    %v657 = vadd.f32 %v636, %v654
    %v658 = vxor.u32 %v657, 2147483648
    %v659 = vmul.f32 %v658, 1.442695
    %v660 = vpow.pop %v659
    %v661 = vadd.f32 %v660, 1.0
    %v662 = vrcp.pop %v661
    %v663 = vmul.f32 %v661, %v662
    %v664 = vsub.f32 1.0, %v663
    %v665 = vmul.f32 %v662, %v664
    %v666 = vadd.f32 %v662, %v665
    %vm667 = vweird.f32 %v661
    %vm668 = vweird.f32 %v662
    %vm669 = vmor %vm667, %vm668
    %v670 = vsel %vm669, %v662, %v666
    %v671 = vand.u32 2147483647, %v661
    %vm672 = vcmp.eq.f32.partialorder %v671, 8.507059e+37
    %v673 = vand.u32 %v661, 2147483648
    %v674 = vor.u32 1.1754944e-38, %v673
    %v675 = vsel %vm672, %v674, %v670
    %v676 = vmul.f32 1.0, %v675
    %v677 = vtanh.pop %v657
    %v678 = vmul.f32 %v676, %v628
    %680 = vrot.lane.b32.xlu0 %v677, 64
    %v681 = vpop.permute.xlu0 %680
    %v683 = vmul.f32 %v676, %v681
    %685 = vrot.lane.b32.xlu0 %v683, 32
    %v686 = vpop.permute.xlu0 %685
    %v688 = vadd.f32 %v678, %v686
    %v689 = vtanh.pop %v688
    %691 = vrot.lane.b32.xlu0 %v689, 64
    %v692 = vpop.permute.xlu0 %691
    %v694 = vmul.f32 %v676, %v692
    %s695 = scalar_lea.vmem [#allocation2], 56
    %v696 = vld [vmem:[%s695] sm:$0xff]
    %v697 = vpack.c.bf16 %v694, %v694
    %699 = vrot.lane.b32.xlu0 %v697, 32
    %v700 = vpop.permute.xlu0 %699
    %v702 = vsel %vm280, %v700, 0
    %704 = vmatpush.bf16.msra.mxu0 0
    %705 = vmatpush.bf16.msra.mxu0 0
    %706 = vmatpush.bf16.msra.mxu0 0
    %707 = vmatpush.bf16.msra.mxu0 0
    %708 = vmatpush.bf16.msra.mxu0 0
    %709 = vmatpush.bf16.msra.mxu0 0
    %710 = vmatpush.bf16.msra.mxu0 %v277
    %711 = vmatpush.bf16.msra.mxu0 %v276
    %712 = vmatmul.bf16.gmra.mxu0 %v702
    %v713 = vpop.f32.mrf.mxu0
    %v714 = vadd.f32 0.0, %v713
    %v715 = vpop.f32.mrf.mxu0
    %716 = vdwg.mxu0
    %v717 = vadd.f32 %v696, %v714
    %v718 = vxor.u32 %v717, 2147483648
    %v719 = vmul.f32 %v718, 1.442695
    %v720 = vpow.pop %v719
    %v721 = vadd.f32 %v720, 1.0
    %v722 = vrcp.pop %v721
    %v723 = vmul.f32 %v721, %v722
    %v724 = vsub.f32 1.0, %v723
    %v725 = vmul.f32 %v722, %v724
    %v726 = vadd.f32 %v722, %v725
    %vm727 = vweird.f32 %v721
    %vm728 = vweird.f32 %v722
    %vm729 = vmor %vm727, %vm728
    %v730 = vsel %vm729, %v722, %v726
    %v731 = vand.u32 2147483647, %v721
    %vm732 = vcmp.eq.f32.partialorder %v731, 8.507059e+37
    %v733 = vand.u32 %v721, 2147483648
    %v734 = vor.u32 1.1754944e-38, %v733
    %v735 = vsel %vm732, %v734, %v730
    %v736 = vmul.f32 1.0, %v735
    %v737 = vtanh.pop %v717
    %v738 = vmul.f32 %v736, %v688
    %740 = vrot.lane.b32.xlu0 %v737, 64
    %v741 = vpop.permute.xlu0 %740
    %v743 = vmul.f32 %v736, %v741
    %745 = vrot.lane.b32.xlu0 %v743, 32
    %v746 = vpop.permute.xlu0 %745
    %v748 = vadd.f32 %v738, %v746
    %v749 = vtanh.pop %v748
    %751 = vrot.lane.b32.xlu0 %v749, 64
    %v752 = vpop.permute.xlu0 %751
    %v754 = vmul.f32 %v736, %v752
    %v755 = vpack.c.bf16 %v754, %v754
    %v756 = vld [vmem:[#allocation12] sm:$0xf]
    %v757 = vld [vmem:[#allocation12 + $0x4] sm:$0xf]
    %v758 = vld [vmem:[#allocation12 + $0x8] sm:$0xf]
    %v759 = vld [vmem:[#allocation12 + $0xc] sm:$0xf]
    %v760 = vld [vmem:[%s7] sm:$0x1]
    %v762 = vperm.slane %v760, 0
    %765 = vrot.lane.b32.xlu0 %v755, 32
    %v766 = vpop.permute.xlu0 %765
    %v771 = vunpack.c.l.b16 %v756
    %v772 = vunpack.c.l.b16 %v757
    %v773 = vunpack.c.l.b16 %v758
    %v774 = vunpack.c.l.b16 %v759
    %v775 = vpack.c.b16 %v772, %v771
    %v776 = vpack.c.b16 %v774, %v773
    %v780 = vsel %vm280, %v766, 0
    %782 = vmatpush.bf16.msra.mxu0 0
    %783 = vmatpush.bf16.msra.mxu0 0
    %784 = vmatpush.bf16.msra.mxu0 0
    %785 = vmatpush.bf16.msra.mxu0 0
    %786 = vmatpush.bf16.msra.mxu0 0
    %787 = vmatpush.bf16.msra.mxu0 0
    %788 = vmatpush.bf16.msra.mxu0 %v776
    %789 = vmatpush.bf16.msra.mxu0 %v775
    %790 = vmatmul.bf16.gmra.mxu0 %v780
    %v791 = vpop.f32.mrf.mxu0
    %v792 = vadd.f32 %v762, %v791
    %v793 = vpop.f32.mrf.mxu0
    %794 = vdwg.mxu0
    %v795 = vld [vmem:[#allocation6] sm:$0xff]
    %v796 = vld [vmem:[#allocation6 + $0x8] sm:$0xff]
    %v797 = vld [vmem:[#allocation6 + $0x10] sm:$0xff]
    %v798 = vld [vmem:[#allocation6 + $0x18] sm:$0xff]
    %v799 = vld [vmem:[#allocation6 + $0x20] sm:$0xff]
    %v800 = vld [vmem:[#allocation6 + $0x28] sm:$0xff]
    %v801 = vld [vmem:[#allocation6 + $0x30] sm:$0xff]
    %v802 = vpack.c.bf16 %v796, %v795
    %v803 = vpack.c.bf16 %v798, %v797
    %v804 = vpack.c.bf16 %v800, %v799
    %v805 = vpack.c.bf16 %v801, %v801
    %v806 = vld [vmem:[#allocation11] sm:$0xf]
    %v807 = vld [vmem:[#allocation11 + $0x4] sm:$0xf]
    %v808 = vld [vmem:[#allocation11 + $0x8] sm:$0xf]
    %v809 = vld [vmem:[#allocation11 + $0xc] sm:$0xf]
    %v810 = vld [vmem:[#allocation11 + $0x10] sm:$0xf]
    %v811 = vld [vmem:[#allocation11 + $0x14] sm:$0xf]
    %v812 = vld [vmem:[#allocation11 + $0x18] sm:$0xf]
    %v813 = vld [vmem:[#allocation11 + $0x1c] sm:$0xf]
    %v814 = vld [vmem:[#allocation11 + $0x20] sm:$0xf]
    %v815 = vld [vmem:[#allocation11 + $0x24] sm:$0xf]
    %v816 = vld [vmem:[#allocation11 + $0x28] sm:$0xf]
    %v817 = vld [vmem:[#allocation11 + $0x2c] sm:$0xf]
    %v818 = vld [vmem:[#allocation11 + $0x30] sm:$0xf]
    %v819 = vld [vmem:[#allocation11 + $0x34] sm:$0xf]
    %v820 = vld [vmem:[#allocation11 + $0x38] sm:$0xf]
    %v821 = vld [vmem:[#allocation11 + $0x3c] sm:$0xf]
    %v838 = vunpack.c.l.b16 %v806
    %v839 = vunpack.c.l.b16 %v807
    %v840 = vunpack.c.l.b16 %v808
    %v841 = vunpack.c.l.b16 %v809
    %v842 = vunpack.c.l.b16 %v810
    %v843 = vunpack.c.l.b16 %v811
    %v844 = vunpack.c.l.b16 %v812
    %v845 = vunpack.c.l.b16 %v813
    %v846 = vunpack.c.l.b16 %v814
    %v847 = vunpack.c.l.b16 %v815
    %v848 = vunpack.c.l.b16 %v816
    %v849 = vunpack.c.l.b16 %v817
    %v850 = vunpack.c.l.b16 %v818
    %v851 = vunpack.c.l.b16 %v819
    %v852 = vunpack.c.l.b16 %v820
    %v853 = vunpack.c.l.b16 %v821
    %v854 = vpack.c.b16 %v839, %v838
    %v855 = vpack.c.b16 %v841, %v840
    %v856 = vpack.c.b16 %v843, %v842
    %v857 = vpack.c.b16 %v845, %v844
    %v858 = vpack.c.b16 %v847, %v846
    %v859 = vpack.c.b16 %v849, %v848
    %v860 = vpack.c.b16 %v851, %v850
    %v861 = vpack.c.b16 %v853, %v852
    %870 = vmatpush.bf16.msra.mxu0 %v861
    %871 = vmatpush.bf16.msra.mxu0 %v860
    %872 = vmatpush.bf16.msra.mxu0 %v859
    %873 = vmatpush.bf16.msra.mxu0 %v858
    %874 = vmatpush.bf16.msra.mxu0 %v857
    %875 = vmatpush.bf16.msra.mxu0 %v856
    %876 = vmatpush.bf16.msra.mxu0 %v855
    %877 = vmatpush.bf16.msra.mxu0 %v854
    %878 = vmatmul.bf16.gmra.mxu0 %v802
    %v879 = vpop.f32.mrf.mxu0
    %v880 = vadd.f32 %v792, %v879
    %v881 = vpop.f32.mrf.mxu0
    %v882 = vadd.f32 %v792, %v881
    %883 = vmatmul.bf16.gmra.mxu0 %v803
    %v884 = vpop.f32.mrf.mxu0
    %v885 = vadd.f32 %v792, %v884
    %v886 = vpop.f32.mrf.mxu0
    %v887 = vadd.f32 %v792, %v886
    %888 = vmatmul.bf16.gmra.mxu0 %v804
    %v889 = vpop.f32.mrf.mxu0
    %v890 = vadd.f32 %v792, %v889
    %v891 = vpop.f32.mrf.mxu0
    %v892 = vadd.f32 %v792, %v891
    %893 = vmatmul.bf16.gmra.mxu0 %v805
    %v894 = vpop.f32.mrf.mxu0
    %v895 = vadd.f32 %v792, %v894
    %v896 = vpop.f32.mrf.mxu0
    %897 = vdwg.mxu0
    %v898 = vxor.u32 %v880, 2147483648
    %v899 = vxor.u32 %v882, 2147483648
    %v900 = vxor.u32 %v885, 2147483648
    %v901 = vxor.u32 %v887, 2147483648
    %v902 = vxor.u32 %v890, 2147483648
    %v903 = vxor.u32 %v892, 2147483648
    %v904 = vxor.u32 %v895, 2147483648
    %v905 = vmul.f32 %v898, 1.442695
    %v906 = vpow.pop %v905
    %v907 = vmul.f32 %v899, 1.442695
    %v908 = vpow.pop %v907
    %v909 = vmul.f32 %v900, 1.442695
    %v910 = vpow.pop %v909
    %v911 = vmul.f32 %v901, 1.442695
    %v912 = vpow.pop %v911
    %v913 = vmul.f32 %v902, 1.442695
    %v914 = vpow.pop %v913
    %v915 = vmul.f32 %v903, 1.442695
    %v916 = vpow.pop %v915
    %v917 = vmul.f32 %v904, 1.442695
    %v918 = vpow.pop %v917
    %v919 = vadd.f32 %v906, 1.0
    %v920 = vadd.f32 %v908, 1.0
    %v921 = vadd.f32 %v910, 1.0
    %v922 = vadd.f32 %v912, 1.0
    %v923 = vadd.f32 %v914, 1.0
    %v924 = vadd.f32 %v916, 1.0
    %v925 = vadd.f32 %v918, 1.0
    %v926 = vrcp.pop %v919
    %v927 = vmul.f32 %v919, %v926
    %v928 = vsub.f32 1.0, %v927
    %v929 = vmul.f32 %v926, %v928
    %v930 = vadd.f32 %v926, %v929
    %vm931 = vweird.f32 %v919
    %vm932 = vweird.f32 %v926
    %vm933 = vmor %vm931, %vm932
    %v934 = vsel %vm933, %v926, %v930
    %v935 = vand.u32 2147483647, %v919
    %vm936 = vcmp.eq.f32.partialorder %v935, 8.507059e+37
    %v937 = vand.u32 %v919, 2147483648
    %v938 = vor.u32 1.1754944e-38, %v937
    %v939 = vsel %vm936, %v938, %v934
    %v940 = vmul.f32 1.0, %v939
    %v941 = vrcp.pop %v920
    %v942 = vmul.f32 %v920, %v941
    %v943 = vsub.f32 1.0, %v942
    %v944 = vmul.f32 %v941, %v943
    %v945 = vadd.f32 %v941, %v944
    %vm946 = vweird.f32 %v920
    %vm947 = vweird.f32 %v941
    %vm948 = vmor %vm946, %vm947
    %v949 = vsel %vm948, %v941, %v945
    %v950 = vand.u32 2147483647, %v920
    %vm951 = vcmp.eq.f32.partialorder %v950, 8.507059e+37
    %v952 = vand.u32 %v920, 2147483648
    %v953 = vor.u32 1.1754944e-38, %v952
    %v954 = vsel %vm951, %v953, %v949
    %v955 = vmul.f32 1.0, %v954
    %v956 = vrcp.pop %v921
    %v957 = vmul.f32 %v921, %v956
    %v958 = vsub.f32 1.0, %v957
    %v959 = vmul.f32 %v956, %v958
    %v960 = vadd.f32 %v956, %v959
    %vm961 = vweird.f32 %v921
    %vm962 = vweird.f32 %v956
    %vm963 = vmor %vm961, %vm962
    %v964 = vsel %vm963, %v956, %v960
    %v965 = vand.u32 2147483647, %v921
    %vm966 = vcmp.eq.f32.partialorder %v965, 8.507059e+37
    %v967 = vand.u32 %v921, 2147483648
    %v968 = vor.u32 1.1754944e-38, %v967
    %v969 = vsel %vm966, %v968, %v964
    %v970 = vmul.f32 1.0, %v969
    %v971 = vrcp.pop %v922
    %v972 = vmul.f32 %v922, %v971
    %v973 = vsub.f32 1.0, %v972
    %v974 = vmul.f32 %v971, %v973
    %v975 = vadd.f32 %v971, %v974
    %vm976 = vweird.f32 %v922
    %vm977 = vweird.f32 %v971
    %vm978 = vmor %vm976, %vm977
    %v979 = vsel %vm978, %v971, %v975
    %v980 = vand.u32 2147483647, %v922
    %vm981 = vcmp.eq.f32.partialorder %v980, 8.507059e+37
    %v982 = vand.u32 %v922, 2147483648
    %v983 = vor.u32 1.1754944e-38, %v982
    %v984 = vsel %vm981, %v983, %v979
    %v985 = vmul.f32 1.0, %v984
    %v986 = vrcp.pop %v923
    %v987 = vmul.f32 %v923, %v986
    %v988 = vsub.f32 1.0, %v987
    %v989 = vmul.f32 %v986, %v988
    %v990 = vadd.f32 %v986, %v989
    %vm991 = vweird.f32 %v923
    %vm992 = vweird.f32 %v986
    %vm993 = vmor %vm991, %vm992
    %v994 = vsel %vm993, %v986, %v990
    %v995 = vand.u32 2147483647, %v923
    %vm996 = vcmp.eq.f32.partialorder %v995, 8.507059e+37
    %v997 = vand.u32 %v923, 2147483648
    %v998 = vor.u32 1.1754944e-38, %v997
    %v999 = vsel %vm996, %v998, %v994
    %v1000 = vmul.f32 1.0, %v999
    %v1001 = vrcp.pop %v924
    %v1002 = vmul.f32 %v924, %v1001
    %v1003 = vsub.f32 1.0, %v1002
    %v1004 = vmul.f32 %v1001, %v1003
    %v1005 = vadd.f32 %v1001, %v1004
    %vm1006 = vweird.f32 %v924
    %vm1007 = vweird.f32 %v1001
    %vm1008 = vmor %vm1006, %vm1007
    %v1009 = vsel %vm1008, %v1001, %v1005
    %v1010 = vand.u32 2147483647, %v924
    %vm1011 = vcmp.eq.f32.partialorder %v1010, 8.507059e+37
    %v1012 = vand.u32 %v924, 2147483648
    %v1013 = vor.u32 1.1754944e-38, %v1012
    %v1014 = vsel %vm1011, %v1013, %v1009
    %v1015 = vmul.f32 1.0, %v1014
    %v1016 = vrcp.pop %v925
    %v1017 = vmul.f32 %v925, %v1016
    %v1018 = vsub.f32 1.0, %v1017
    %v1019 = vmul.f32 %v1016, %v1018
    %v1020 = vadd.f32 %v1016, %v1019
    %vm1021 = vweird.f32 %v925
    %vm1022 = vweird.f32 %v1016
    %vm1023 = vmor %vm1021, %vm1022
    %v1024 = vsel %vm1023, %v1016, %v1020
    %v1025 = vand.u32 2147483647, %v925
    %vm1026 = vcmp.eq.f32.partialorder %v1025, 8.507059e+37
    %v1027 = vand.u32 %v925, 2147483648
    %v1028 = vor.u32 1.1754944e-38, %v1027
    %v1029 = vsel %vm1026, %v1028, %v1024
    %v1030 = vmul.f32 1.0, %v1029
    %v1031 = vtanh.pop %v880
    %v1032 = vtanh.pop %v882
    %v1033 = vtanh.pop %v885
    %v1034 = vtanh.pop %v887
    %v1035 = vtanh.pop %v890
    %v1036 = vtanh.pop %v892
    %v1037 = vtanh.pop %v895
    %v1038 = vmul.f32 %v940, %v748
    %v1039 = vmul.f32 %v955, %v748
    %v1040 = vmul.f32 %v970, %v748
    %v1041 = vmul.f32 %v985, %v748
    %v1042 = vmul.f32 %v1000, %v748
    %v1043 = vmul.f32 %v1015, %v748
    %v1044 = vmul.f32 %v1030, %v748
    %1052 = vrot.lane.b32.xlu0 %v1031, 64
    %v1053 = vpop.permute.xlu0 %1052
    %1054 = vrot.lane.b32.xlu0 %v1032, 64
    %v1055 = vpop.permute.xlu0 %1054
    %1056 = vrot.lane.b32.xlu0 %v1033, 64
    %v1057 = vpop.permute.xlu0 %1056
    %1058 = vrot.lane.b32.xlu0 %v1034, 64
    %v1059 = vpop.permute.xlu0 %1058
    %1060 = vrot.lane.b32.xlu0 %v1035, 64
    %v1061 = vpop.permute.xlu0 %1060
    %1062 = vrot.lane.b32.xlu0 %v1036, 64
    %v1063 = vpop.permute.xlu0 %1062
    %1064 = vrot.lane.b32.xlu0 %v1037, 64
    %v1065 = vpop.permute.xlu0 %1064
    %v1073 = vmul.f32 %v940, %v1053
    %v1074 = vmul.f32 %v955, %v1055
    %v1075 = vmul.f32 %v970, %v1057
    %v1076 = vmul.f32 %v985, %v1059
    %v1077 = vmul.f32 %v1000, %v1061
    %v1078 = vmul.f32 %v1015, %v1063
    %v1079 = vmul.f32 %v1030, %v1065
    %1087 = vrot.lane.b32.xlu0 %v1073, 32
    %v1088 = vpop.permute.xlu0 %1087
    %1089 = vrot.lane.b32.xlu0 %v1074, 32
    %v1090 = vpop.permute.xlu0 %1089
    %1091 = vrot.lane.b32.xlu0 %v1075, 32
    %v1092 = vpop.permute.xlu0 %1091
    %1093 = vrot.lane.b32.xlu0 %v1076, 32
    %v1094 = vpop.permute.xlu0 %1093
    %1095 = vrot.lane.b32.xlu0 %v1077, 32
    %v1096 = vpop.permute.xlu0 %1095
    %1097 = vrot.lane.b32.xlu0 %v1078, 32
    %v1098 = vpop.permute.xlu0 %1097
    %1099 = vrot.lane.b32.xlu0 %v1079, 32
    %v1100 = vpop.permute.xlu0 %1099
    %v1108 = vadd.f32 %v1038, %v1088
    %v1109 = vadd.f32 %v1039, %v1090
    %v1110 = vadd.f32 %v1040, %v1092
    %v1111 = vadd.f32 %v1041, %v1094
    %v1112 = vadd.f32 %v1042, %v1096
    %v1113 = vadd.f32 %v1043, %v1098
    %v1114 = vadd.f32 %v1044, %v1100
    %v1115 = vtanh.pop %v1108
    %v1116 = vtanh.pop %v1109
    %v1117 = vtanh.pop %v1110
    %v1118 = vtanh.pop %v1111
    %v1119 = vtanh.pop %v1112
    %v1120 = vtanh.pop %v1113
    %v1121 = vtanh.pop %v1114
    %1129 = vrot.lane.b32.xlu0 %v1115, 64
    %v1130 = vpop.permute.xlu0 %1129
    %1131 = vrot.lane.b32.xlu0 %v1116, 64
    %v1132 = vpop.permute.xlu0 %1131
    %1133 = vrot.lane.b32.xlu0 %v1117, 64
    %v1134 = vpop.permute.xlu0 %1133
    %1135 = vrot.lane.b32.xlu0 %v1118, 64
    %v1136 = vpop.permute.xlu0 %1135
    %1137 = vrot.lane.b32.xlu0 %v1119, 64
    %v1138 = vpop.permute.xlu0 %1137
    %1139 = vrot.lane.b32.xlu0 %v1120, 64
    %v1140 = vpop.permute.xlu0 %1139
    %1141 = vrot.lane.b32.xlu0 %v1121, 64
    %v1142 = vpop.permute.xlu0 %1141
    %v1150 = vmul.f32 %v940, %v1130
    %v1151 = vmul.f32 %v955, %v1132
    %v1152 = vmul.f32 %v970, %v1134
    %v1153 = vmul.f32 %v985, %v1136
    %v1154 = vmul.f32 %v1000, %v1138
    %v1155 = vmul.f32 %v1015, %v1140
    %v1156 = vmul.f32 %v1030, %v1142
    %v1157 = vpack.c.bf16 %v1151, %v1150
    %v1158 = vpack.c.bf16 %v1153, %v1152
    %v1159 = vpack.c.bf16 %v1155, %v1154
    %v1160 = vpack.c.bf16 %v1156, %v1156
    %v1161 = vld [vmem:[#allocation14] sm:$0xf]
    %v1162 = vld [vmem:[#allocation14 + $0x4] sm:$0xf]
    %v1163 = vld [vmem:[#allocation14 + $0x8] sm:$0xf]
    %v1164 = vld [vmem:[#allocation14 + $0xc] sm:$0xf]
    %v1165 = vld [vmem:[%s9] sm:$0x1]
    %v1167 = vperm.slane %v1165, 0
    %1173 = vrot.lane.b32.xlu0 %v1157, 32
    %v1174 = vpop.permute.xlu0 %1173
    %1175 = vrot.lane.b32.xlu0 %v1158, 32
    %v1176 = vpop.permute.xlu0 %1175
    %1177 = vrot.lane.b32.xlu0 %v1159, 32
    %v1178 = vpop.permute.xlu0 %1177
    %1179 = vrot.lane.b32.xlu0 %v1160, 32
    %v1180 = vpop.permute.xlu0 %1179
    %v1185 = vunpack.c.l.b16 %v1161
    %v1186 = vunpack.c.l.b16 %v1162
    %v1187 = vunpack.c.l.b16 %v1163
    %v1188 = vunpack.c.l.b16 %v1164
    %v1189 = vpack.c.b16 %v1186, %v1185
    %v1190 = vpack.c.b16 %v1188, %v1187
    %v1194 = vsel %vm280, %v1174, 0
    %v1197 = vsel %vm280, %v1176, 0
    %v1200 = vsel %vm280, %v1178, 0
    %v1203 = vsel %vm280, %v1180, 0
    %1205 = vmatpush.bf16.msra.mxu0 0
    %1206 = vmatpush.bf16.msra.mxu0 0
    %1207 = vmatpush.bf16.msra.mxu0 0
    %1208 = vmatpush.bf16.msra.mxu0 0
    %1209 = vmatpush.bf16.msra.mxu0 0
    %1210 = vmatpush.bf16.msra.mxu0 0
    %1211 = vmatpush.bf16.msra.mxu0 %v1190
    %1212 = vmatpush.bf16.msra.mxu0 %v1189
    %1213 = vmatmul.bf16.gmra.mxu0 %v1194
    %v1214 = vpop.f32.mrf.mxu0
    %v1215 = vadd.f32 %v1167, %v1214
    %v1216 = vpop.f32.mrf.mxu0
    %v1217 = vadd.f32 %v1167, %v1216
    %1218 = vmatmul.bf16.gmra.mxu0 %v1197
    %v1219 = vpop.f32.mrf.mxu0
    %v1220 = vadd.f32 %v1167, %v1219
    %v1221 = vpop.f32.mrf.mxu0
    %v1222 = vadd.f32 %v1167, %v1221
    %1223 = vmatmul.bf16.gmra.mxu0 %v1200
    %v1224 = vpop.f32.mrf.mxu0
    %v1225 = vadd.f32 %v1167, %v1224
    %v1226 = vpop.f32.mrf.mxu0
    %v1227 = vadd.f32 %v1167, %v1226
    %1228 = vmatmul.bf16.gmra.mxu0 %v1203
    %v1229 = vpop.f32.mrf.mxu0
    %v1230 = vadd.f32 %v1167, %v1229
    %v1231 = vpop.f32.mrf.mxu0
    %1232 = vdwg.mxu0
    %1233 = vst [vmem:[#allocation15] sm:$0xff] %v1215
    %1234 = vst [vmem:[#allocation15 + $0x8] sm:$0xff] %v1217
    %1235 = vst [vmem:[#allocation15 + $0x10] sm:$0xff] %v1220
    %1236 = vst [vmem:[#allocation15 + $0x18] sm:$0xff] %v1222
    %1237 = vst [vmem:[#allocation15 + $0x20] sm:$0xff] %v1225
    %1238 = vst [vmem:[#allocation15 + $0x28] sm:$0xff] %v1227
    %1239 = vst [vmem:[#allocation15 + $0x30] sm:$0xff] %v1230
    // Predicated region
    $region70: #{tpu_custom_call.1} parent=1 // pred_check
      _
    $region71: #{tpu_custom_call.1} parent=1 // pred_check_branch
      %1241 = sbr.rel (0) target = $region73
    $region72: #{tpu_custom_call.1} parent=1 // pred_region
      %1243 = vsyncadd [#allocation5], 0
      %s1244 = sshll.u32 [#allocation15], 4
      %s1245 = int_to_ptr.vmem [resolvable:$true] %s1244
      %s1246 = sshll.u32 %s10, 4
      %s1247 = int_to_ptr.hbm [resolvable:$true] %s1246
      %1252 = dma.vmem_to_hbm [thread:$0]  %s1245, 896, %s1247, [#allocation5], 128, 128, 8
    $region73: #{tpu_custom_call.1} parent=1 // pred_fallthru
      _
    // Predicated region
    $region74: #{tpu_custom_call.1} parent=1 // pred_check
      _
    $region75: #{tpu_custom_call.1} parent=1 // pred_check_branch
      %1254 = sbr.rel (0) target = $region77
    $region76: #{tpu_custom_call.1} parent=1 // pred_region
      %1256 = dma.done [#allocation5], 896
    $region77: #{tpu_custom_call.1} parent=1 // pred_fallthru
      _
    %1257 = vsyncpa [#allocation4], 1
    %1258 = vsyncpa [#allocation7], 1
    %1259 = vsyncpa [#allocation10], 1
    %1260 = vsyncpa [#allocation13], 1
    %1261 = vsyncpa [#allocation5], 1

</llo_original>
